<compile_context>
chip_gen: v7x
topology: tpu7x:2x2x1
jax: 0.10.0
libtpu: 0.0.40
codegen_flags: <defaults>
</compile_context>

<pallas_src>
import functools

import jax
import jax.numpy as jnp
from jax import lax
from jax.experimental import pallas as pl
from jax.experimental.pallas import tpu as pltpu


D = 512      # pooler hidden size (fixed by the module: Pooler(512))
EPS = 1e-6   # nn.CosineSimilarity eps


def _evidence_kernel(q_hbm, e_hbm, rel_ref, w_ref, b_ref,
                     rel_out, nrel_out,
                     q_buf, e_buf, sem, *, B, E):
    """Single-step kernel: DMA tok-0 rows, pool (Linear+tanh), cosine, fused reduction.

    q_hbm   : [B,   S, D]  f32  (memory_space=ANY)  query hidden states
    e_hbm   : [E*B, S, D]  f32  (memory_space=ANY)  evidence hidden states (E,B flattened)
    rel_ref : [E, 1]       f32  VMEM  relevance flags (1.0 / 0.0)
    w_ref   : [D, D]       bf16 VMEM  pooler weight, pre-transposed to [in, out]
    b_ref   : [1, D]       f32  VMEM  pooler bias
    rel_out : [1, B]       f32  best distance over relevant evidences   (init 1.0)
    nrel_out: [1, B]       f32  fuzzy-NOT best over non-relevant ones   (init 0.0)
    q_buf   : [B,   1, D]  f32  VMEM scratch (query token-0 rows)
    e_buf   : [E*B, 1, D]  f32  VMEM scratch (evidence token-0 rows)
    """
    # --- fused gather: DMA only the token-0 rows straight out of HBM (strided) ---
    cq = pltpu.make_async_copy(q_hbm.at[:, 0:1, :], q_buf, sem.at[0])
    ce = pltpu.make_async_copy(e_hbm.at[:, 0:1, :], e_buf, sem.at[1])
    cq.start()
    ce.start()
    cq.wait()
    ce.wait()

    wt = w_ref[...]                                             # [D, D] bf16, [in, out]
    bias = b_ref[...]                                           # [1, D] f32

    q0 = q_buf[...].reshape(B, D).astype(jnp.bfloat16)          # [B, D]
    e0 = e_buf[...].reshape(E * B, D).astype(jnp.bfloat16)      # [E*B, D]

    # Pooler: tanh(x @ W^T + b).  W is already [in, out], so the contraction is the
    # natural (lhs dim 1, rhs dim 0) — no 512x512 transpose inside the kernel.
    # bf16 operands, f32 accumulate; all later math stays f32 (v5e-safe).
    pq = jnp.tanh(
        lax.dot_general(q0, wt, (((1,), (0,)), ((), ())),
                        preferred_element_type=jnp.float32) + bias)        # [B, D]
    pe = jnp.tanh(
        lax.dot_general(e0, wt, (((1,), (0,)), ((), ())),
                        preferred_element_type=jnp.float32) + bias)        # [E*B, D]
    pe = pe.reshape(E, B, D)                                               # [E, B, D]

    # Cosine similarity (PyTorch per-vector max(||x||, eps) semantics).
    # 1/max(||q||,eps) is folded into the query rows so every intermediate keeps a
    # clean 2-D/3-D (sublane, lane) layout; rsqrt / tanh run on the EUP.
    inv_q = lax.rsqrt(jnp.maximum(
        jnp.sum(pq * pq, axis=-1, keepdims=True), EPS * EPS))              # [B, 1]
    pqn = pq * inv_q                                                       # [B, D]
    num = jnp.sum(pe * pqn[None, :, :], axis=-1)                           # [E, B]
    inv_e = lax.rsqrt(jnp.maximum(jnp.sum(pe * pe, axis=-1), EPS * EPS))   # [E, B]
    dist = num * inv_e                                                     # [E, B]

    # --- fused epilogue: best-distance reduction (was a separate XLA while-loop) ---
    rel = rel_ref[...] > 0.5                                               # [E, 1] bool

    # Relevant branch: "if d < best: best = d" starting from 1.0
    #               == min(1.0, min over relevant distances)  (exact, vectorized).
    rel_out[...] = jnp.minimum(
        jnp.min(jnp.where(rel, dist, jnp.inf), axis=0, keepdims=True), 1.0)

    # Non-relevant branch keeps the original *sequential, non-monotone* update:
    #     elif d > best: best = fuzzy_NOT(d)            (fuzzy_NOT modeled as 1 - x)
    # E is a static trace-time constant, so a tiny unrolled loop is exact and cheap.
    not_best = jnp.zeros((1, B), jnp.float32)
    for e in range(E):
        d_e = dist[e:e + 1, :]                                             # [1, B]
        take = jnp.logical_and(jnp.logical_not(rel[e:e + 1, :]), d_e > not_best)
        not_best = jnp.where(take, 1.0 - d_e, not_best)
    nrel_out[...] = not_best


@jax.jit
def _train_scores(x, evidence_outs, w, b, rel_f):
    """x: [B,S,D] f32; evidence_outs: [E,B,S,D] f32; w: [D,D] torch [out,in]; b: [D];
    rel_f: [E,1] f32 (1.0 = relevant).  Returns (rel_best [B], not_rel_best [B])."""
    B, S, d = x.shape
    E = evidence_outs.shape[0]
    assert d == D

    # Layout-only / fused glue: transpose+cast the pooler weight once (so the kernel
    # never transposes it) and flatten (E, B) so the evidence DMA is a rank-3 slice.
    wt = w.T.astype(jnp.bfloat16)                        # [in, out] bf16
    b2 = b.reshape(1, D).astype(jnp.float32)             # [1, D]
    ev_flat = evidence_outs.reshape(E * B, S, D)         # contiguous -> free reshape

    kernel = functools.partial(_evidence_kernel, B=B, E=E)

    rel_best, not_best = pl.pallas_call(
        kernel,
        out_shape=(jax.ShapeDtypeStruct((1, B), jnp.float32),
                   jax.ShapeDtypeStruct((1, B), jnp.float32)),
        grid=(1,),                                       # everything fits one step (<1 MiB VMEM)
        in_specs=[
            pl.BlockSpec(memory_space=pl.ANY),           # query hidden states stay in HBM
            pl.BlockSpec(memory_space=pl.ANY),           # evidence hidden states stay in HBM
            pl.BlockSpec((E, 1), lambda i: (0, 0)),      # relevance flags (f32 0/1)
            pl.BlockSpec((D, D), lambda i: (0, 0)),      # pooler weight [in, out] bf16
            pl.BlockSpec((1, D), lambda i: (0, 0)),      # pooler bias f32
        ],
        out_specs=(pl.BlockSpec((1, B), lambda i: (0, 0)),
                   pl.BlockSpec((1, B), lambda i: (0, 0))),
        scratch_shapes=[
            pltpu.VMEM((B, 1, D), jnp.float32),          # query tok-0 rows
            pltpu.VMEM((E * B, 1, D), jnp.float32),      # evidence tok-0 rows
            pltpu.SemaphoreType.DMA((2,)),
        ],
        compiler_params=pltpu.CompilerParams(
            dimension_semantics=("arbitrary",)),         # single step: nothing to shard
    )(x, ev_flat, rel_f, wt, b2)
    return rel_best[0], not_best[0]


def nn_evidence_check_forward(x, w, b, evidence_outs=None, relevance=None, train=False):
    """Mirrors NN_EvidenceCheck.forward with the external transformers as identity.

    x             : [B, S, D] query hidden states (stand-in for transformer_qerry output)
    evidence_outs : [E, B, S, D] evidence hidden states (stand-in for text+transformer output)
    relevance     : length-E bools per evidence
    """
    out_qerry = x          # TODO(synk): transformer_qerry (external) treated as identity
    mem = None
    aux_loss = jnp.float32(0.0)

    if not train:
        return out_qerry, mem, aux_loss, None

    rel_f = jnp.asarray([1.0 if bool(r) else 0.0 for r in relevance],
                        dtype=jnp.float32).reshape(-1, 1)        # [E, 1]
    rel_best, not_rel_best = _train_scores(x, evidence_outs, w, b, rel_f)
    return out_qerry, mem, aux_loss, (rel_best, not_rel_best)


def _reference_scores(x, evidence_outs, w, b, relevance):
    """Pure-JAX f32 reference of the defined hot path (self-test only)."""
    pq = jnp.tanh(x[:, 0, :] @ w.T + b)                          # [B, D]
    pe = jnp.tanh(evidence_outs[:, :, 0, :] @ w.T + b)           # [E, B, D]
    nq = jnp.maximum(jnp.linalg.norm(pq, axis=-1), EPS)          # [B]
    ne = jnp.maximum(jnp.linalg.norm(pe, axis=-1), EPS)          # [E, B]
    dist = jnp.sum(pe * pq[None], axis=-1) / (ne * nq[None])     # [E, B]
    B = x.shape[0]
    rel_best = jnp.ones((B,), jnp.float32)
    not_best = jnp.zeros((B,), jnp.float32)
    for e in range(dist.shape[0]):
        d = dist[e]
        if bool(relevance[e]):
            rel_best = jnp.where(d < rel_best, d, rel_best)
        else:
            not_best = jnp.where(d > not_best, 1.0 - d, not_best)
    return rel_best, not_best


if __name__ == "__main__":
    key = jax.random.PRNGKey(0)
    k1, k2, k3, k4 = jax.random.split(key, 4)

    B, S, E = 2, 8, 3   # small batch / seq / #evidences; hidden fixed at 512 by the module

    x = jax.random.normal(k1, (B, S, D), jnp.float32)
    # Evidences correlated with the query so cosine scores sit well away from the
    # data-dependent branch boundaries of the sequential update (keeps the bf16
    # self-test numerically stable).
    noise = jax.random.normal(k2, (E, B, S, D), jnp.float32)
    evidence_outs = 0.7 * x[None] + 0.7 * noise

    # Deterministic Pooler parameters (nn.Linear(512, 512)): W [out, in], b [out]
    w = jax.random.normal(k3, (D, D), jnp.float32) * 0.02
    b = jax.random.normal(k4, (D,), jnp.float32) * 0.02

    relevance = [True, False, True]

    out_qerry, mem, aux_loss, (rel_best, not_rel_best) = nn_evidence_check_forward(
        x, w, b, evidence_outs=evidence_outs, relevance=relevance, train=True)
    jax.block_until_ready(rel_best)
    jax.block_until_ready(not_rel_best)
    jax.block_until_ready(out_qerry)

    assert out_qerry.shape == (B, S, D)
    assert rel_best.shape == (B,) and not_rel_best.shape == (B,)

    # Self-test against a pure-JAX f32 reference (bf16 MXU operands -> loose tolerance).
    ref_rel, ref_not = _reference_scores(x, evidence_outs, w, b, relevance)
    assert jnp.allclose(rel_best, ref_rel, atol=2e-2), (rel_best, ref_rel)
    assert jnp.allclose(not_rel_best, ref_not, atol=2e-2), (not_rel_best, ref_not)

    print("KERNEL_OK")
</pallas_src>

<mosaic_0001>
module attributes {stable_mosaic.version = 11 : i64} {
  func.func @_evidence_kernel(%arg0: i32, %arg1: memref<2x8x512xf32, #tpu.memory_space<any>>, %arg2: memref<6x8x512xf32, #tpu.memory_space<any>>, %arg3: memref<3x1xf32, #tpu.memory_space<vmem>>, %arg4: memref<512x512xbf16, #tpu.memory_space<vmem>>, %arg5: memref<1x512xf32, #tpu.memory_space<vmem>>, %arg6: memref<1x2xf32, #tpu.memory_space<vmem>>, %arg7: memref<1x2xf32, #tpu.memory_space<vmem>>, %arg8: memref<2x1x512xf32, #tpu.memory_space<vmem>>, %arg9: memref<6x1x512xf32, #tpu.memory_space<vmem>>, %arg10: memref<2x!tpu.dma_semaphore, #tpu.memory_space<semaphore_mem>>) attributes {dimension_semantics = [#tpu.dimension_semantics<arbitrary>], iteration_bounds = array<i64: 1>, scalar_prefetch = 0 : i64, scratch_operands = 3 : i64, tpu.core_type = #tpu.core_type<tc>, window_params = [{}, {}, {pipeline_mode = #tpu.pipeline_mode<synchronous>, transform_indices = @transform_2, window_bounds = array<i64: 3, 1>}, {pipeline_mode = #tpu.pipeline_mode<synchronous>, transform_indices = @transform_3, window_bounds = array<i64: 512, 512>}, {pipeline_mode = #tpu.pipeline_mode<synchronous>, transform_indices = @transform_4, window_bounds = array<i64: 1, 512>}, {pipeline_mode = #tpu.pipeline_mode<synchronous>, transform_indices = @transform_5, window_bounds = array<i64: 1, 2>}, {pipeline_mode = #tpu.pipeline_mode<synchronous>, transform_indices = @transform_6, window_bounds = array<i64: 1, 2>}]} {
    %c0_i32 = arith.constant 0 : i32
    %c0_i32_0 = arith.constant 0 : i32
    %c0_i32_1 = arith.constant 0 : i32
    %c0_i32_2 = arith.constant 0 : i32
    %0 = tpu.memref_slice %arg1[%c0_i32_0, %c0_i32_1, %c0_i32_2] : memref<2x8x512xf32, #tpu.memory_space<any>> -> memref<2x1x512xf32, #tpu.memory_space<any>>
    %1 = tpu.memref_slice %arg10[%c0_i32] : memref<2x!tpu.dma_semaphore, #tpu.memory_space<semaphore_mem>> -> memref<1x!tpu.dma_semaphore, #tpu.memory_space<semaphore_mem>>
    %2 = tpu.memref_squeeze %1 : memref<1x!tpu.dma_semaphore, #tpu.memory_space<semaphore_mem>> -> memref<!tpu.dma_semaphore, #tpu.memory_space<semaphore_mem>>
    tpu.enqueue_dma source(%0 : memref<2x1x512xf32, #tpu.memory_space<any>>) target(%arg8 : memref<2x1x512xf32, #tpu.memory_space<vmem>>) target_semaphore(%2 : memref<!tpu.dma_semaphore, #tpu.memory_space<semaphore_mem>>)
    %c1_i32 = arith.constant 1 : i32
    %c0_i32_3 = arith.constant 0 : i32
    %c0_i32_4 = arith.constant 0 : i32
    %c0_i32_5 = arith.constant 0 : i32
    %3 = tpu.memref_slice %arg2[%c0_i32_3, %c0_i32_4, %c0_i32_5] : memref<6x8x512xf32, #tpu.memory_space<any>> -> memref<6x1x512xf32, #tpu.memory_space<any>>
    %4 = tpu.memref_slice %arg10[%c1_i32] : memref<2x!tpu.dma_semaphore, #tpu.memory_space<semaphore_mem>> -> memref<1x!tpu.dma_semaphore, #tpu.memory_space<semaphore_mem>>
    %5 = tpu.memref_squeeze %4 : memref<1x!tpu.dma_semaphore, #tpu.memory_space<semaphore_mem>> -> memref<!tpu.dma_semaphore, #tpu.memory_space<semaphore_mem>>
    tpu.enqueue_dma source(%3 : memref<6x1x512xf32, #tpu.memory_space<any>>) target(%arg9 : memref<6x1x512xf32, #tpu.memory_space<vmem>>) target_semaphore(%5 : memref<!tpu.dma_semaphore, #tpu.memory_space<semaphore_mem>>)
    %c0_i32_6 = arith.constant 0 : i32
    %c0_i32_7 = arith.constant 0 : i32
    %c0_i32_8 = arith.constant 0 : i32
    %c0_i32_9 = arith.constant 0 : i32
    %6 = tpu.memref_slice %arg1[%c0_i32_7, %c0_i32_8, %c0_i32_9] : memref<2x8x512xf32, #tpu.memory_space<any>> -> memref<2x1x512xf32, #tpu.memory_space<any>>
    %7 = tpu.memref_slice %arg10[%c0_i32_6] : memref<2x!tpu.dma_semaphore, #tpu.memory_space<semaphore_mem>> -> memref<1x!tpu.dma_semaphore, #tpu.memory_space<semaphore_mem>>
    %8 = tpu.memref_squeeze %7 : memref<1x!tpu.dma_semaphore, #tpu.memory_space<semaphore_mem>> -> memref<!tpu.dma_semaphore, #tpu.memory_space<semaphore_mem>>
    tpu.wait_dma2 semaphore(%8 : memref<!tpu.dma_semaphore, #tpu.memory_space<semaphore_mem>>) src(%6 : memref<2x1x512xf32, #tpu.memory_space<any>>) dst(%arg8 : memref<2x1x512xf32, #tpu.memory_space<vmem>>)
    %c1_i32_10 = arith.constant 1 : i32
    %c0_i32_11 = arith.constant 0 : i32
    %c0_i32_12 = arith.constant 0 : i32
    %c0_i32_13 = arith.constant 0 : i32
    %9 = tpu.memref_slice %arg2[%c0_i32_11, %c0_i32_12, %c0_i32_13] : memref<6x8x512xf32, #tpu.memory_space<any>> -> memref<6x1x512xf32, #tpu.memory_space<any>>
    %10 = tpu.memref_slice %arg10[%c1_i32_10] : memref<2x!tpu.dma_semaphore, #tpu.memory_space<semaphore_mem>> -> memref<1x!tpu.dma_semaphore, #tpu.memory_space<semaphore_mem>>
    %11 = tpu.memref_squeeze %10 : memref<1x!tpu.dma_semaphore, #tpu.memory_space<semaphore_mem>> -> memref<!tpu.dma_semaphore, #tpu.memory_space<semaphore_mem>>
    tpu.wait_dma2 semaphore(%11 : memref<!tpu.dma_semaphore, #tpu.memory_space<semaphore_mem>>) src(%9 : memref<6x1x512xf32, #tpu.memory_space<any>>) dst(%arg9 : memref<6x1x512xf32, #tpu.memory_space<vmem>>)
    %c0 = arith.constant 0 : index
    %c0_14 = arith.constant 0 : index
    %12 = vector.load %arg4[%c0, %c0_14] : memref<512x512xbf16, #tpu.memory_space<vmem>>, vector<512x512xbf16>
    %c0_15 = arith.constant 0 : index
    %c0_16 = arith.constant 0 : index
    %13 = vector.load %arg5[%c0_15, %c0_16] : memref<1x512xf32, #tpu.memory_space<vmem>>, vector<1x512xf32>
    %c0_17 = arith.constant 0 : index
    %c0_18 = arith.constant 0 : index
    %c0_19 = arith.constant 0 : index
    %14 = vector.load %arg8[%c0_17, %c0_18, %c0_19] : memref<2x1x512xf32, #tpu.memory_space<vmem>>, vector<2x1x512xf32>
    %15 = vector.shape_cast %14 : vector<2x1x512xf32> to vector<2x512xf32>
    %16 = arith.truncf %15 : vector<2x512xf32> to vector<2x512xbf16>
    %c0_20 = arith.constant 0 : index
    %c0_21 = arith.constant 0 : index
    %c0_22 = arith.constant 0 : index
    %17 = vector.load %arg9[%c0_20, %c0_21, %c0_22] : memref<6x1x512xf32, #tpu.memory_space<vmem>>, vector<6x1x512xf32>
    %18 = vector.shape_cast %17 : vector<6x1x512xf32> to vector<6x512xf32>
    %19 = arith.truncf %18 : vector<6x512xf32> to vector<6x512xbf16>
    %cst = arith.constant dense<0.000000e+00> : vector<2x512xf32>
    %20 = tpu.matmul %16, %12, %cst {dimension_numbers = #tpu.dot_dimension_numbers<[1], [0], [0], [1], [0, 0, 1, 1], [], []>} : vector<2x512xbf16>, vector<512x512xbf16>, vector<2x512xf32> -> vector<2x512xf32>
    %21 = vector.broadcast %13 : vector<1x512xf32> to vector<2x512xf32>
    %22 = arith.addf %20, %21 : vector<2x512xf32>
    %23 = math.tanh %22 : vector<2x512xf32>
    %cst_23 = arith.constant dense<0.000000e+00> : vector<6x512xf32>
    %24 = tpu.matmul %19, %12, %cst_23 {dimension_numbers = #tpu.dot_dimension_numbers<[1], [0], [0], [1], [0, 0, 1, 1], [], []>} : vector<6x512xbf16>, vector<512x512xbf16>, vector<6x512xf32> -> vector<6x512xf32>
    %25 = vector.broadcast %13 : vector<1x512xf32> to vector<6x512xf32>
    %26 = arith.addf %24, %25 : vector<6x512xf32>
    %27 = math.tanh %26 : vector<6x512xf32>
    %28 = vector.shape_cast %27 : vector<6x512xf32> to vector<3x2x512xf32>
    %29 = arith.mulf %23, %23 : vector<2x512xf32>
    %cst_24 = arith.constant dense<0.000000e+00> : vector<2xf32>
    %30 = vector.multi_reduction <add>, %29, %cst_24 [1] : vector<2x512xf32> to vector<2xf32>
    %31 = vector.shape_cast %30 : vector<2xf32> to vector<2x1xf32>
    %cst_25 = arith.constant 9.99999996E-13 : f32
    %32 = vector.broadcast %cst_25 : f32 to vector<2x1xf32>
    %33 = arith.maximumf %31, %32 : vector<2x1xf32>
    %34 = math.rsqrt %33 : vector<2x1xf32>
    %35 = vector.broadcast %34 : vector<2x1xf32> to vector<2x512xf32>
    %36 = arith.mulf %23, %35 : vector<2x512xf32>
    %37 = vector.shape_cast %36 : vector<2x512xf32> to vector<1x2x512xf32>
    %38 = vector.broadcast %37 : vector<1x2x512xf32> to vector<3x2x512xf32>
    %39 = arith.mulf %28, %38 : vector<3x2x512xf32>
    %cst_26 = arith.constant dense<0.000000e+00> : vector<3x2xf32>
    %40 = vector.multi_reduction <add>, %39, %cst_26 [2] : vector<3x2x512xf32> to vector<3x2xf32>
    %41 = arith.mulf %28, %28 : vector<3x2x512xf32>
    %cst_27 = arith.constant dense<0.000000e+00> : vector<3x2xf32>
    %42 = vector.multi_reduction <add>, %41, %cst_27 [2] : vector<3x2x512xf32> to vector<3x2xf32>
    %cst_28 = arith.constant 9.99999996E-13 : f32
    %43 = vector.broadcast %cst_28 : f32 to vector<3x2xf32>
    %44 = arith.maximumf %42, %43 : vector<3x2xf32>
    %45 = math.rsqrt %44 : vector<3x2xf32>
    %46 = arith.mulf %40, %45 : vector<3x2xf32>
    %c0_29 = arith.constant 0 : index
    %c0_30 = arith.constant 0 : index
    %47 = vector.load %arg3[%c0_29, %c0_30] : memref<3x1xf32, #tpu.memory_space<vmem>>, vector<3x1xf32>
    %cst_31 = arith.constant 5.000000e-01 : f32
    %48 = vector.broadcast %cst_31 : f32 to vector<3x1xf32>
    %49 = arith.cmpf ogt, %47, %48 : vector<3x1xf32>
    %cst_32 = arith.constant 0x7F800000 : f32
    %50 = vector.shape_cast %49 : vector<3x1xi1> to vector<3x1xi1>
    %51 = vector.broadcast %50 : vector<3x1xi1> to vector<3x2xi1>
    %52 = vector.broadcast %cst_32 : f32 to vector<3x2xf32>
    %53 = arith.select %51, %46, %52 : vector<3x2xi1>, vector<3x2xf32>
    %cst_33 = arith.constant dense<0x7F800000> : vector<2xf32>
    %54 = vector.multi_reduction <minimumf>, %53, %cst_33 [0] : vector<3x2xf32> to vector<2xf32>
    %55 = vector.shape_cast %54 : vector<2xf32> to vector<1x2xf32>
    %cst_34 = arith.constant 1.000000e+00 : f32
    %56 = vector.broadcast %cst_34 : f32 to vector<1x2xf32>
    %57 = arith.minimumf %55, %56 : vector<1x2xf32>
    %c0_35 = arith.constant 0 : index
    %c0_36 = arith.constant 0 : index
    %58 = vector.load %arg6[%c0_35, %c0_36] : memref<1x2xf32, #tpu.memory_space<vmem>>, vector<1x2xf32>
    tpu.vector_store %arg6[%c0_35, %c0_36], %57 {strides = array<i32>} : memref<1x2xf32, #tpu.memory_space<vmem>>, vector<1x2xf32>,
    %cst_37 = arith.constant 0.000000e+00 : f32
    %59 = vector.broadcast %cst_37 : f32 to vector<1x2xf32>
    %60 = vector.extract_strided_slice %46 {offsets = [0, 0], sizes = [1, 2], strides = [1, 1]} : vector<3x2xf32> to vector<1x2xf32>
    %61 = vector.extract_strided_slice %49 {offsets = [0, 0], sizes = [1, 1], strides = [1, 1]} : vector<3x1xi1> to vector<1x1xi1>
    %cst_38 = arith.constant dense<true> : vector<1x1xi1>
    %62 = arith.xori %61, %cst_38 : vector<1x1xi1>
    %63 = arith.cmpf ogt, %60, %59 : vector<1x2xf32>
    %64 = vector.broadcast %62 : vector<1x1xi1> to vector<1x2xi1>
    %65 = arith.andi %64, %63 : vector<1x2xi1>
    %cst_39 = arith.constant 1.000000e+00 : f32
    %66 = vector.broadcast %cst_39 : f32 to vector<1x2xf32>
    %67 = arith.subf %66, %60 : vector<1x2xf32>
    %68 = arith.select %65, %67, %59 : vector<1x2xi1>, vector<1x2xf32>
    %69 = vector.extract_strided_slice %46 {offsets = [1, 0], sizes = [1, 2], strides = [1, 1]} : vector<3x2xf32> to vector<1x2xf32>
    %70 = vector.extract_strided_slice %49 {offsets = [1, 0], sizes = [1, 1], strides = [1, 1]} : vector<3x1xi1> to vector<1x1xi1>
    %cst_40 = arith.constant dense<true> : vector<1x1xi1>
    %71 = arith.xori %70, %cst_40 : vector<1x1xi1>
    %72 = arith.cmpf ogt, %69, %68 : vector<1x2xf32>
    %73 = vector.broadcast %71 : vector<1x1xi1> to vector<1x2xi1>
    %74 = arith.andi %73, %72 : vector<1x2xi1>
    %cst_41 = arith.constant 1.000000e+00 : f32
    %75 = vector.broadcast %cst_41 : f32 to vector<1x2xf32>
    %76 = arith.subf %75, %69 : vector<1x2xf32>
    %77 = arith.select %74, %76, %68 : vector<1x2xi1>, vector<1x2xf32>
    %78 = vector.extract_strided_slice %46 {offsets = [2, 0], sizes = [1, 2], strides = [1, 1]} : vector<3x2xf32> to vector<1x2xf32>
    %79 = vector.extract_strided_slice %49 {offsets = [2, 0], sizes = [1, 1], strides = [1, 1]} : vector<3x1xi1> to vector<1x1xi1>
    %cst_42 = arith.constant dense<true> : vector<1x1xi1>
    %80 = arith.xori %79, %cst_42 : vector<1x1xi1>
    %81 = arith.cmpf ogt, %78, %77 : vector<1x2xf32>
    %82 = vector.broadcast %80 : vector<1x1xi1> to vector<1x2xi1>
    %83 = arith.andi %82, %81 : vector<1x2xi1>
    %cst_43 = arith.constant 1.000000e+00 : f32
    %84 = vector.broadcast %cst_43 : f32 to vector<1x2xf32>
    %85 = arith.subf %84, %78 : vector<1x2xf32>
    %86 = arith.select %83, %85, %77 : vector<1x2xi1>, vector<1x2xf32>
    %c0_44 = arith.constant 0 : index
    %c0_45 = arith.constant 0 : index
    %87 = vector.load %arg7[%c0_44, %c0_45] : memref<1x2xf32, #tpu.memory_space<vmem>>, vector<1x2xf32>
    tpu.vector_store %arg7[%c0_44, %c0_45], %86 {strides = array<i32>} : memref<1x2xf32, #tpu.memory_space<vmem>>, vector<1x2xf32>,
    return
  }
  func.func @transform_2(%arg0: i32) -> (i32, i32) {
    %c0_i32 = arith.constant 0 : i32
    %c0_i32_0 = arith.constant 0 : i32
    %c0_i32_1 = arith.constant 0 : i32
    return %c0_i32, %c0_i32_0 : i32, i32
  }
  func.func @transform_3(%arg0: i32) -> (i32, i32) {
    %c0_i32 = arith.constant 0 : i32
    %c0_i32_0 = arith.constant 0 : i32
    %c0_i32_1 = arith.constant 0 : i32
    return %c0_i32, %c0_i32_0 : i32, i32
  }
  func.func @transform_4(%arg0: i32) -> (i32, i32) {
    %c0_i32 = arith.constant 0 : i32
    %c0_i32_0 = arith.constant 0 : i32
    %c0_i32_1 = arith.constant 0 : i32
    return %c0_i32, %c0_i32_0 : i32, i32
  }
  func.func @transform_5(%arg0: i32) -> (i32, i32) {
    %c0_i32 = arith.constant 0 : i32
    %c0_i32_0 = arith.constant 0 : i32
    %c0_i32_1 = arith.constant 0 : i32
    return %c0_i32, %c0_i32_0 : i32, i32
  }
  func.func @transform_6(%arg0: i32) -> (i32, i32) {
    %c0_i32 = arith.constant 0 : i32
    %c0_i32_0 = arith.constant 0 : i32
    %c0_i32_1 = arith.constant 0 : i32
    return %c0_i32, %c0_i32_0 : i32, i32
  }
}

</mosaic_0001>

<llo_original>
// kernel: _train_scores.1
$region0: #{_train_scores.1}
  #allocation0 [shape = 'u32[]', space=smem, size = 0x4, offset = 0x4, fixed_abs, tag = 'smem constant byte address 0x4 - core index']
  #allocation1 [shape = 'u32[144,128]{1,0:T(1,128)}', space=vmem, size = 0x12000, scoped, tag = 'internal scratch']
  #allocation2 [shape = 'f32[2,1,512]{2,1,0:T(1,128)}', space=vmem, size = 0x1000, scoped, tag = 'scratch operand']
  #allocation3 [shape = 'f32[6,1,512]{2,1,0:T(1,128)}', space=vmem, size = 0x3000, scoped, tag = 'scratch operand']
  #allocation4 [shape = 's32[2]{0}', space=sflag, size = 0x8, scoped, tag = 'scratch operand']
  #allocation9 [shape = 's32[]', space=sflag, size = 0x4, offset = 0, fixed_abs, tag = 'sflag constant byte address 0x0 - dummy sync flag']
  #allocation10 [shape = 's32[]', space=sflag, size = 0x4, offset = 0, fixed_abs, tag = 'sflag constant byte address 0x0 - dummy sync flag']
  %s0 = inlined_call_operand.vmem [shape: f32[2,8,512], index: 0, kind: input, shape index: {}]
  %s1 = inlined_call_operand.vmem [shape: f32[6,8,512], index: 1, kind: input, shape index: {}]
  %s2 = inlined_call_operand.vmem [shape: f32[3,1], index: 2, kind: input, shape index: {}]
  %s3 = inlined_call_operand.vmem [shape: bf16[512,512], index: 3, kind: input, shape index: {}]
  %s4 = inlined_call_operand.vmem [shape: f32[1,512], index: 4, kind: input, shape index: {}]
  %s5 = inlined_call_operand.hbm [shape: f32[1,2], index: 5, kind: output, shape index: {0}]
  %s6 = inlined_call_operand.hbm [shape: f32[1,2], index: 6, kind: output, shape index: {1}]
  %7 = xla_tuple %s5, %s6
  %s8 = sld [smem:[#allocation0]]
  $region104: #{_train_scores.1} parent=0
    _
  %s10 = ssub.s32 1, %s8
  %s11 = scalar_select 0, %s10, %s8
  $region1: #{_train_scores.1} parent=0
    #allocation5 [shape = 'u8[512]{0}', space=vmem, size = 0x400, scoped, tag = 'output window, operand 0, single buffered']
    #allocation6 [shape = 's32[1]{0}', space=sflag, size = 0x4, scoped, tag = 'scoped memory for _train_scores.1']
    #allocation7 [shape = 'u8[512]{0}', space=vmem, size = 0x400, scoped, tag = 'output window, operand 1, single buffered']
    #allocation8 [shape = 's32[1]{0}', space=sflag, size = 0x4, scoped, tag = 'scoped memory for _train_scores.1']
    %12 = vsyncpa [#allocation6], 0
    %13 = vsyncpa [#allocation8], 0
    // Predicated region
    $region2: #{_train_scores.1} parent=1 // pred_check
      _
    $region3: #{_train_scores.1} parent=1 // pred_check_branch
      %15 = sbr.rel (0) target = $region5
    $region4: #{_train_scores.1} parent=1 // pred_region
      _
    $region5: #{_train_scores.1} parent=1 // pred_fallthru
      _
    // Predicated region
    $region6: #{_train_scores.1} parent=1 // pred_check
      _
    $region7: #{_train_scores.1} parent=1 // pred_check_branch
      %17 = sbr.rel (0) target = $region9
    $region8: #{_train_scores.1} parent=1 // pred_region
      _
    $region9: #{_train_scores.1} parent=1 // pred_fallthru
      _
    // Predicated region
    $region10: #{_train_scores.1} parent=1 // pred_check
      _
    $region11: #{_train_scores.1} parent=1 // pred_check_branch
      %19 = sbr.rel (0) target = $region13
    $region12: #{_train_scores.1} parent=1 // pred_region
      _
    $region13: #{_train_scores.1} parent=1 // pred_fallthru
      _
    %p21 = scmp.lt.u32.totalorder 1, 8
    %p22 = pneg %p21
    // Predicated region
    $region14: #{_train_scores.1} parent=1 // pred_check
      _
    $region15: #{_train_scores.1} parent=1 // pred_check_branch
      %24 = sbr.rel (%p21) target = $region17
    $region16: #{_train_scores.1} parent=1 // pred_region
      %s53 = sand.u32 1, 7
      %p54 = scmp.eq.s32.totalorder %s53, 0
      %p55 = pneg %p54
      // Predicated region
      $region29: #{_train_scores.1} parent=16 // pred_check
        _
      $region30: #{_train_scores.1} parent=16 // pred_check_branch
        %57 = sbr.rel (%p54) target = $region32
      $region31: #{_train_scores.1} parent=16 // pred_region
        %s58 = sand.u32 1, 7
        %s59 = ssub.s32 1, %s58
        %s60 = scalar_lea.vmem %s0, %s59
        %s61 = ssub.s32 1, %s58
        %s62 = scalar_lea.vmem [#allocation2], %s61
        loop: start=0, step=1, limit=1
        $region33: #{_train_scores.1} parent=31 // loop_pre_header
          _
        $region34: #{_train_scores.1} parent=31 // loop_header
          %s64 = sphi 0, %s68
          %p65 = scmp.ge.s32.totalorder %s64, 1
          %s69 = sphi %s0, %s0
          %s70 = sphi [#allocation2], [#allocation2]
        $region35: #{_train_scores.1} parent=31 // loop_header_branch
          %67 = sbr.rel (%p65) target = $region39
        $region36: #{_train_scores.1} parent=31 // loop_body
          _
        $region37: #{_train_scores.1} parent=31 // loop_footer
          %s68 = sadd.s32 1, %s64
        $region38: #{_train_scores.1} parent=31 // loop_footer_branch
          %63 = sbr.rel target = $region34
        $region39: #{_train_scores.1} parent=31 // loop_exit
          _
        %s71 = sshllo.u32 0, %s58
        loop: start=0, step=1, limit=1
        $region40: #{_train_scores.1} parent=31 // loop_pre_header
          _
        $region41: #{_train_scores.1} parent=31 // loop_header
          %s73 = sphi 0, %s77
          %p74 = scmp.ge.s32.totalorder %s73, 1
          %s78 = sphi %s60, %s60
          %s79 = sphi %s62, %s62
        $region42: #{_train_scores.1} parent=31 // loop_header_branch
          %76 = sbr.rel (%p74) target = $region46
        $region43: #{_train_scores.1} parent=31 // loop_body
          %v80 = vld [vmem:[%s78] sm:%s71]
          %81 = vst [vmem:[%s79] sm:%s71] %v80
          %v82 = vld [vmem:[%s78 + $0x8] sm:%s71]
          %83 = vst [vmem:[%s79 + $0x1] sm:%s71] %v82
          %v84 = vld [vmem:[%s78 + $0x10] sm:%s71]
          %85 = vst [vmem:[%s79 + $0x2] sm:%s71] %v84
          %v86 = vld [vmem:[%s78 + $0x18] sm:%s71]
          %87 = vst [vmem:[%s79 + $0x3] sm:%s71] %v86
          %v88 = vld [vmem:[%s78 + $0x20] sm:%s71]
          %89 = vst [vmem:[%s79 + $0x4] sm:%s71] %v88
          %v90 = vld [vmem:[%s78 + $0x28] sm:%s71]
          %91 = vst [vmem:[%s79 + $0x5] sm:%s71] %v90
          %v92 = vld [vmem:[%s78 + $0x30] sm:%s71]
          %93 = vst [vmem:[%s79 + $0x6] sm:%s71] %v92
          %v94 = vld [vmem:[%s78 + $0x38] sm:%s71]
          %95 = vst [vmem:[%s79 + $0x7] sm:%s71] %v94
        $region44: #{_train_scores.1} parent=31 // loop_footer
          %s77 = sadd.s32 1, %s73
        $region45: #{_train_scores.1} parent=31 // loop_footer_branch
          %72 = sbr.rel target = $region41
        $region46: #{_train_scores.1} parent=31 // loop_exit
          _
      $region32: #{_train_scores.1} parent=16 // pred_fallthru
        _
    $region17: #{_train_scores.1} parent=1 // pred_fallthru
      _
    // Predicated region
    $region18: #{_train_scores.1} parent=1 // pred_check
      %p25 = pneg %p21
    $region19: #{_train_scores.1} parent=1 // pred_check_branch
      %27 = sbr.rel (%p25) target = $region21
    $region20: #{_train_scores.1} parent=1 // pred_region
      %s28 = sshllo.u32 0, 1
      loop: start=0, step=1, limit=1
      $region22: #{_train_scores.1} parent=20 // loop_pre_header
        _
      $region23: #{_train_scores.1} parent=20 // loop_header
        %s30 = sphi 0, %s34
        %p31 = scmp.ge.s32.totalorder %s30, 1
        %s35 = sphi %s0, %s0
        %s36 = sphi [#allocation2], [#allocation2]
      $region24: #{_train_scores.1} parent=20 // loop_header_branch
        %33 = sbr.rel (%p31) target = $region28
      $region25: #{_train_scores.1} parent=20 // loop_body
        %v37 = vld [vmem:[%s35] sm:%s28]
        %38 = vst [vmem:[%s36] sm:%s28] %v37
        %v39 = vld [vmem:[%s35 + $0x8] sm:%s28]
        %40 = vst [vmem:[%s36 + $0x1] sm:%s28] %v39
        %v41 = vld [vmem:[%s35 + $0x10] sm:%s28]
        %42 = vst [vmem:[%s36 + $0x2] sm:%s28] %v41
        %v43 = vld [vmem:[%s35 + $0x18] sm:%s28]
        %44 = vst [vmem:[%s36 + $0x3] sm:%s28] %v43
        %v45 = vld [vmem:[%s35 + $0x20] sm:%s28]
        %46 = vst [vmem:[%s36 + $0x4] sm:%s28] %v45
        %v47 = vld [vmem:[%s35 + $0x28] sm:%s28]
        %48 = vst [vmem:[%s36 + $0x5] sm:%s28] %v47
        %v49 = vld [vmem:[%s35 + $0x30] sm:%s28]
        %50 = vst [vmem:[%s36 + $0x6] sm:%s28] %v49
        %v51 = vld [vmem:[%s35 + $0x38] sm:%s28]
        %52 = vst [vmem:[%s36 + $0x7] sm:%s28] %v51
      $region26: #{_train_scores.1} parent=20 // loop_footer
        %s34 = sadd.s32 1, %s30
      $region27: #{_train_scores.1} parent=20 // loop_footer_branch
        %29 = sbr.rel target = $region23
      $region28: #{_train_scores.1} parent=20 // loop_exit
        _
    $region21: #{_train_scores.1} parent=1 // pred_fallthru
      _
    // Predicated region
    $region47: #{_train_scores.1} parent=1 // pred_check
      _
    $region48: #{_train_scores.1} parent=1 // pred_check_branch
      %98 = sbr.rel (0) target = $region50
    $region49: #{_train_scores.1} parent=1 // pred_region
      %99 = vsyncadd [#allocation4], 128
    $region50: #{_train_scores.1} parent=1 // pred_fallthru
      _
    %s100 = scalar_lea.sflag [#allocation4], 1
    %p102 = scmp.lt.u32.totalorder 1, 8
    %p103 = pneg %p102
    // Predicated region
    $region51: #{_train_scores.1} parent=1 // pred_check
      _
    $region52: #{_train_scores.1} parent=1 // pred_check_branch
      %105 = sbr.rel (%p102) target = $region54
    $region53: #{_train_scores.1} parent=1 // pred_region
      %s166 = sand.u32 1, 7
      %p167 = scmp.eq.s32.totalorder %s166, 0
      %p168 = pneg %p167
      // Predicated region
      $region66: #{_train_scores.1} parent=53 // pred_check
        _
      $region67: #{_train_scores.1} parent=53 // pred_check_branch
        %170 = sbr.rel (%p167) target = $region69
      $region68: #{_train_scores.1} parent=53 // pred_region
        %s171 = sand.u32 1, 7
        %s172 = ssub.s32 1, %s171
        %s173 = scalar_lea.vmem %s1, %s172
        %s174 = ssub.s32 1, %s171
        %s175 = scalar_lea.vmem [#allocation3], %s174
        loop: start=0, step=1, limit=1
        $region70: #{_train_scores.1} parent=68 // loop_pre_header
          _
        $region71: #{_train_scores.1} parent=68 // loop_header
          %s177 = sphi 0, %s181
          %p178 = scmp.ge.s32.totalorder %s177, 1
          %s182 = sphi %s1, %s1
          %s183 = sphi [#allocation3], [#allocation3]
        $region72: #{_train_scores.1} parent=68 // loop_header_branch
          %180 = sbr.rel (%p178) target = $region76
        $region73: #{_train_scores.1} parent=68 // loop_body
          _
        $region74: #{_train_scores.1} parent=68 // loop_footer
          %s181 = sadd.s32 1, %s177
        $region75: #{_train_scores.1} parent=68 // loop_footer_branch
          %176 = sbr.rel target = $region71
        $region76: #{_train_scores.1} parent=68 // loop_exit
          _
        %s184 = sshllo.u32 0, %s171
        loop: start=0, step=1, limit=1
        $region77: #{_train_scores.1} parent=68 // loop_pre_header
          _
        $region78: #{_train_scores.1} parent=68 // loop_header
          %s186 = sphi 0, %s190
          %p187 = scmp.ge.s32.totalorder %s186, 1
          %s191 = sphi %s173, %s173
          %s192 = sphi %s175, %s175
        $region79: #{_train_scores.1} parent=68 // loop_header_branch
          %189 = sbr.rel (%p187) target = $region83
        $region80: #{_train_scores.1} parent=68 // loop_body
          %v193 = vld [vmem:[%s191] sm:%s184]
          %194 = vst [vmem:[%s192] sm:%s184] %v193
          %v195 = vld [vmem:[%s191 + $0x8] sm:%s184]
          %196 = vst [vmem:[%s192 + $0x1] sm:%s184] %v195
          %v197 = vld [vmem:[%s191 + $0x10] sm:%s184]
          %198 = vst [vmem:[%s192 + $0x2] sm:%s184] %v197
          %v199 = vld [vmem:[%s191 + $0x18] sm:%s184]
          %200 = vst [vmem:[%s192 + $0x3] sm:%s184] %v199
          %v201 = vld [vmem:[%s191 + $0x20] sm:%s184]
          %202 = vst [vmem:[%s192 + $0x4] sm:%s184] %v201
          %v203 = vld [vmem:[%s191 + $0x28] sm:%s184]
          %204 = vst [vmem:[%s192 + $0x5] sm:%s184] %v203
          %v205 = vld [vmem:[%s191 + $0x30] sm:%s184]
          %206 = vst [vmem:[%s192 + $0x6] sm:%s184] %v205
          %v207 = vld [vmem:[%s191 + $0x38] sm:%s184]
          %208 = vst [vmem:[%s192 + $0x7] sm:%s184] %v207
          %v209 = vld [vmem:[%s191 + $0x40] sm:%s184]
          %210 = vst [vmem:[%s192 + $0x8] sm:%s184] %v209
          %v211 = vld [vmem:[%s191 + $0x48] sm:%s184]
          %212 = vst [vmem:[%s192 + $0x9] sm:%s184] %v211
          %v213 = vld [vmem:[%s191 + $0x50] sm:%s184]
          %214 = vst [vmem:[%s192 + $0xa] sm:%s184] %v213
          %v215 = vld [vmem:[%s191 + $0x58] sm:%s184]
          %216 = vst [vmem:[%s192 + $0xb] sm:%s184] %v215
          %v217 = vld [vmem:[%s191 + $0x60] sm:%s184]
          %218 = vst [vmem:[%s192 + $0xc] sm:%s184] %v217
          %v219 = vld [vmem:[%s191 + $0x68] sm:%s184]
          %220 = vst [vmem:[%s192 + $0xd] sm:%s184] %v219
          %v221 = vld [vmem:[%s191 + $0x70] sm:%s184]
          %222 = vst [vmem:[%s192 + $0xe] sm:%s184] %v221
          %v223 = vld [vmem:[%s191 + $0x78] sm:%s184]
          %224 = vst [vmem:[%s192 + $0xf] sm:%s184] %v223
          %v225 = vld [vmem:[%s191 + $0x80] sm:%s184]
          %226 = vst [vmem:[%s192 + $0x10] sm:%s184] %v225
          %v227 = vld [vmem:[%s191 + $0x88] sm:%s184]
          %228 = vst [vmem:[%s192 + $0x11] sm:%s184] %v227
          %v229 = vld [vmem:[%s191 + $0x90] sm:%s184]
          %230 = vst [vmem:[%s192 + $0x12] sm:%s184] %v229
          %v231 = vld [vmem:[%s191 + $0x98] sm:%s184]
          %232 = vst [vmem:[%s192 + $0x13] sm:%s184] %v231
          %v233 = vld [vmem:[%s191 + $0xa0] sm:%s184]
          %234 = vst [vmem:[%s192 + $0x14] sm:%s184] %v233
          %v235 = vld [vmem:[%s191 + $0xa8] sm:%s184]
          %236 = vst [vmem:[%s192 + $0x15] sm:%s184] %v235
          %v237 = vld [vmem:[%s191 + $0xb0] sm:%s184]
          %238 = vst [vmem:[%s192 + $0x16] sm:%s184] %v237
          %v239 = vld [vmem:[%s191 + $0xb8] sm:%s184]
          %240 = vst [vmem:[%s192 + $0x17] sm:%s184] %v239
        $region81: #{_train_scores.1} parent=68 // loop_footer
          %s190 = sadd.s32 1, %s186
        $region82: #{_train_scores.1} parent=68 // loop_footer_branch
          %185 = sbr.rel target = $region78
        $region83: #{_train_scores.1} parent=68 // loop_exit
          _
      $region69: #{_train_scores.1} parent=53 // pred_fallthru
        _
    $region54: #{_train_scores.1} parent=1 // pred_fallthru
      _
    // Predicated region
    $region55: #{_train_scores.1} parent=1 // pred_check
      %p106 = pneg %p102
    $region56: #{_train_scores.1} parent=1 // pred_check_branch
      %108 = sbr.rel (%p106) target = $region58
    $region57: #{_train_scores.1} parent=1 // pred_region
      %s109 = sshllo.u32 0, 1
      loop: start=0, step=1, limit=1
      $region59: #{_train_scores.1} parent=57 // loop_pre_header
        _
      $region60: #{_train_scores.1} parent=57 // loop_header
        %s111 = sphi 0, %s115
        %p112 = scmp.ge.s32.totalorder %s111, 1
        %s116 = sphi %s1, %s1
        %s117 = sphi [#allocation3], [#allocation3]
      $region61: #{_train_scores.1} parent=57 // loop_header_branch
        %114 = sbr.rel (%p112) target = $region65
      $region62: #{_train_scores.1} parent=57 // loop_body
        %v118 = vld [vmem:[%s116] sm:%s109]
        %119 = vst [vmem:[%s117] sm:%s109] %v118
        %v120 = vld [vmem:[%s116 + $0x8] sm:%s109]
        %121 = vst [vmem:[%s117 + $0x1] sm:%s109] %v120
        %v122 = vld [vmem:[%s116 + $0x10] sm:%s109]
        %123 = vst [vmem:[%s117 + $0x2] sm:%s109] %v122
        %v124 = vld [vmem:[%s116 + $0x18] sm:%s109]
        %125 = vst [vmem:[%s117 + $0x3] sm:%s109] %v124
        %v126 = vld [vmem:[%s116 + $0x20] sm:%s109]
        %127 = vst [vmem:[%s117 + $0x4] sm:%s109] %v126
        %v128 = vld [vmem:[%s116 + $0x28] sm:%s109]
        %129 = vst [vmem:[%s117 + $0x5] sm:%s109] %v128
        %v130 = vld [vmem:[%s116 + $0x30] sm:%s109]
        %131 = vst [vmem:[%s117 + $0x6] sm:%s109] %v130
        %v132 = vld [vmem:[%s116 + $0x38] sm:%s109]
        %133 = vst [vmem:[%s117 + $0x7] sm:%s109] %v132
        %v134 = vld [vmem:[%s116 + $0x40] sm:%s109]
        %135 = vst [vmem:[%s117 + $0x8] sm:%s109] %v134
        %v136 = vld [vmem:[%s116 + $0x48] sm:%s109]
        %137 = vst [vmem:[%s117 + $0x9] sm:%s109] %v136
        %v138 = vld [vmem:[%s116 + $0x50] sm:%s109]
        %139 = vst [vmem:[%s117 + $0xa] sm:%s109] %v138
        %v140 = vld [vmem:[%s116 + $0x58] sm:%s109]
        %141 = vst [vmem:[%s117 + $0xb] sm:%s109] %v140
        %v142 = vld [vmem:[%s116 + $0x60] sm:%s109]
        %143 = vst [vmem:[%s117 + $0xc] sm:%s109] %v142
        %v144 = vld [vmem:[%s116 + $0x68] sm:%s109]
        %145 = vst [vmem:[%s117 + $0xd] sm:%s109] %v144
        %v146 = vld [vmem:[%s116 + $0x70] sm:%s109]
        %147 = vst [vmem:[%s117 + $0xe] sm:%s109] %v146
        %v148 = vld [vmem:[%s116 + $0x78] sm:%s109]
        %149 = vst [vmem:[%s117 + $0xf] sm:%s109] %v148
        %v150 = vld [vmem:[%s116 + $0x80] sm:%s109]
        %151 = vst [vmem:[%s117 + $0x10] sm:%s109] %v150
        %v152 = vld [vmem:[%s116 + $0x88] sm:%s109]
        %153 = vst [vmem:[%s117 + $0x11] sm:%s109] %v152
        %v154 = vld [vmem:[%s116 + $0x90] sm:%s109]
        %155 = vst [vmem:[%s117 + $0x12] sm:%s109] %v154
        %v156 = vld [vmem:[%s116 + $0x98] sm:%s109]
        %157 = vst [vmem:[%s117 + $0x13] sm:%s109] %v156
        %v158 = vld [vmem:[%s116 + $0xa0] sm:%s109]
        %159 = vst [vmem:[%s117 + $0x14] sm:%s109] %v158
        %v160 = vld [vmem:[%s116 + $0xa8] sm:%s109]
        %161 = vst [vmem:[%s117 + $0x15] sm:%s109] %v160
        %v162 = vld [vmem:[%s116 + $0xb0] sm:%s109]
        %163 = vst [vmem:[%s117 + $0x16] sm:%s109] %v162
        %v164 = vld [vmem:[%s116 + $0xb8] sm:%s109]
        %165 = vst [vmem:[%s117 + $0x17] sm:%s109] %v164
      $region63: #{_train_scores.1} parent=57 // loop_footer
        %s115 = sadd.s32 1, %s111
      $region64: #{_train_scores.1} parent=57 // loop_footer_branch
        %110 = sbr.rel target = $region60
      $region65: #{_train_scores.1} parent=57 // loop_exit
        _
    $region58: #{_train_scores.1} parent=1 // pred_fallthru
      _
    // Predicated region
    $region84: #{_train_scores.1} parent=1 // pred_check
      _
    $region85: #{_train_scores.1} parent=1 // pred_check_branch
      %243 = sbr.rel (0) target = $region87
    $region86: #{_train_scores.1} parent=1 // pred_region
      %244 = vsyncadd %s100, 384
    $region87: #{_train_scores.1} parent=1 // pred_fallthru
      _
    %s245 = smul.u32 2, 1
    %s246 = smul.u32 %s245, 4
    %s247 = sshll.u32 %s246, 4
    %248 = dma.done [#allocation4], %s247
    %s249 = smul.u32 6, 1
    %s250 = smul.u32 %s249, 4
    %s251 = sshll.u32 %s250, 4
    %252 = dma.done %s100, %s251
    %v253 = vld [vmem:[%s3] sm:$0xff]
    %v254 = vld [vmem:[%s3 + $0x8] sm:$0xff]
    %v255 = vld [vmem:[%s3 + $0x10] sm:$0xff]
    %v256 = vld [vmem:[%s3 + $0x18] sm:$0xff]
    %v257 = vld [vmem:[%s3 + $0x20] sm:$0xff]
    %v258 = vld [vmem:[%s3 + $0x28] sm:$0xff]
    %v259 = vld [vmem:[%s3 + $0x30] sm:$0xff]
    %v260 = vld [vmem:[%s3 + $0x38] sm:$0xff]
    %v261 = vld [vmem:[%s3 + $0x40] sm:$0xff]
    %v262 = vld [vmem:[%s3 + $0x48] sm:$0xff]
    %v263 = vld [vmem:[%s3 + $0x50] sm:$0xff]
    %v264 = vld [vmem:[%s3 + $0x58] sm:$0xff]
    %v265 = vld [vmem:[%s3 + $0x60] sm:$0xff]
    %v266 = vld [vmem:[%s3 + $0x68] sm:$0xff]
    %v267 = vld [vmem:[%s3 + $0x70] sm:$0xff]
    %v268 = vld [vmem:[%s3 + $0x78] sm:$0xff]
    %v269 = vld [vmem:[%s3 + $0x80] sm:$0xff]
    %v270 = vld [vmem:[%s3 + $0x88] sm:$0xff]
    %v271 = vld [vmem:[%s3 + $0x90] sm:$0xff]
    %v272 = vld [vmem:[%s3 + $0x98] sm:$0xff]
    %v273 = vld [vmem:[%s3 + $0xa0] sm:$0xff]
    %v274 = vld [vmem:[%s3 + $0xa8] sm:$0xff]
    %v275 = vld [vmem:[%s3 + $0xb0] sm:$0xff]
    %v276 = vld [vmem:[%s3 + $0xb8] sm:$0xff]
    %v277 = vld [vmem:[%s3 + $0xc0] sm:$0xff]
    %v278 = vld [vmem:[%s3 + $0xc8] sm:$0xff]
    %v279 = vld [vmem:[%s3 + $0xd0] sm:$0xff]
    %v280 = vld [vmem:[%s3 + $0xd8] sm:$0xff]
    %v281 = vld [vmem:[%s3 + $0xe0] sm:$0xff]
    %v282 = vld [vmem:[%s3 + $0xe8] sm:$0xff]
    %v283 = vld [vmem:[%s3 + $0xf0] sm:$0xff]
    %v284 = vld [vmem:[%s3 + $0xf8] sm:$0xff]
    %v285 = vld [vmem:[%s3 + $0x100] sm:$0xff]
    %v286 = vld [vmem:[%s3 + $0x108] sm:$0xff]
    %v287 = vld [vmem:[%s3 + $0x110] sm:$0xff]
    %v288 = vld [vmem:[%s3 + $0x118] sm:$0xff]
    %v289 = vld [vmem:[%s3 + $0x120] sm:$0xff]
    %v290 = vld [vmem:[%s3 + $0x128] sm:$0xff]
    %v291 = vld [vmem:[%s3 + $0x130] sm:$0xff]
    %v292 = vld [vmem:[%s3 + $0x138] sm:$0xff]
    %v293 = vld [vmem:[%s3 + $0x140] sm:$0xff]
    %v294 = vld [vmem:[%s3 + $0x148] sm:$0xff]
    %v295 = vld [vmem:[%s3 + $0x150] sm:$0xff]
    %v296 = vld [vmem:[%s3 + $0x158] sm:$0xff]
    %v297 = vld [vmem:[%s3 + $0x160] sm:$0xff]
    %v298 = vld [vmem:[%s3 + $0x168] sm:$0xff]
    %v299 = vld [vmem:[%s3 + $0x170] sm:$0xff]
    %v300 = vld [vmem:[%s3 + $0x178] sm:$0xff]
    %v301 = vld [vmem:[%s3 + $0x180] sm:$0xff]
    %v302 = vld [vmem:[%s3 + $0x188] sm:$0xff]
    %v303 = vld [vmem:[%s3 + $0x190] sm:$0xff]
    %v304 = vld [vmem:[%s3 + $0x198] sm:$0xff]
    %v305 = vld [vmem:[%s3 + $0x1a0] sm:$0xff]
    %v306 = vld [vmem:[%s3 + $0x1a8] sm:$0xff]
    %v307 = vld [vmem:[%s3 + $0x1b0] sm:$0xff]
    %v308 = vld [vmem:[%s3 + $0x1b8] sm:$0xff]
    %v309 = vld [vmem:[%s3 + $0x1c0] sm:$0xff]
    %v310 = vld [vmem:[%s3 + $0x1c8] sm:$0xff]
    %v311 = vld [vmem:[%s3 + $0x1d0] sm:$0xff]
    %v312 = vld [vmem:[%s3 + $0x1d8] sm:$0xff]
    %v313 = vld [vmem:[%s3 + $0x1e0] sm:$0xff]
    %v314 = vld [vmem:[%s3 + $0x1e8] sm:$0xff]
    %v315 = vld [vmem:[%s3 + $0x1f0] sm:$0xff]
    %v316 = vld [vmem:[%s3 + $0x1f8] sm:$0xff]
    %v317 = vld [vmem:[%s3 + $0x200] sm:$0xff]
    %v318 = vld [vmem:[%s3 + $0x208] sm:$0xff]
    %v319 = vld [vmem:[%s3 + $0x210] sm:$0xff]
    %v320 = vld [vmem:[%s3 + $0x218] sm:$0xff]
    %v321 = vld [vmem:[%s3 + $0x220] sm:$0xff]
    %v322 = vld [vmem:[%s3 + $0x228] sm:$0xff]
    %v323 = vld [vmem:[%s3 + $0x230] sm:$0xff]
    %v324 = vld [vmem:[%s3 + $0x238] sm:$0xff]
    %v325 = vld [vmem:[%s3 + $0x240] sm:$0xff]
    %v326 = vld [vmem:[%s3 + $0x248] sm:$0xff]
    %v327 = vld [vmem:[%s3 + $0x250] sm:$0xff]
    %v328 = vld [vmem:[%s3 + $0x258] sm:$0xff]
    %v329 = vld [vmem:[%s3 + $0x260] sm:$0xff]
    %v330 = vld [vmem:[%s3 + $0x268] sm:$0xff]
    %v331 = vld [vmem:[%s3 + $0x270] sm:$0xff]
    %v332 = vld [vmem:[%s3 + $0x278] sm:$0xff]
    %v333 = vld [vmem:[%s3 + $0x280] sm:$0xff]
    %v334 = vld [vmem:[%s3 + $0x288] sm:$0xff]
    %v335 = vld [vmem:[%s3 + $0x290] sm:$0xff]
    %v336 = vld [vmem:[%s3 + $0x298] sm:$0xff]
    %v337 = vld [vmem:[%s3 + $0x2a0] sm:$0xff]
    %v338 = vld [vmem:[%s3 + $0x2a8] sm:$0xff]
    %v339 = vld [vmem:[%s3 + $0x2b0] sm:$0xff]
    %v340 = vld [vmem:[%s3 + $0x2b8] sm:$0xff]
    %v341 = vld [vmem:[%s3 + $0x2c0] sm:$0xff]
    %v342 = vld [vmem:[%s3 + $0x2c8] sm:$0xff]
    %v343 = vld [vmem:[%s3 + $0x2d0] sm:$0xff]
    %v344 = vld [vmem:[%s3 + $0x2d8] sm:$0xff]
    %v345 = vld [vmem:[%s3 + $0x2e0] sm:$0xff]
    %v346 = vld [vmem:[%s3 + $0x2e8] sm:$0xff]
    %v347 = vld [vmem:[%s3 + $0x2f0] sm:$0xff]
    %v348 = vld [vmem:[%s3 + $0x2f8] sm:$0xff]
    %v349 = vld [vmem:[%s3 + $0x300] sm:$0xff]
    %v350 = vld [vmem:[%s3 + $0x308] sm:$0xff]
    %v351 = vld [vmem:[%s3 + $0x310] sm:$0xff]
    %v352 = vld [vmem:[%s3 + $0x318] sm:$0xff]
    %v353 = vld [vmem:[%s3 + $0x320] sm:$0xff]
    %v354 = vld [vmem:[%s3 + $0x328] sm:$0xff]
    %v355 = vld [vmem:[%s3 + $0x330] sm:$0xff]
    %v356 = vld [vmem:[%s3 + $0x338] sm:$0xff]
    %v357 = vld [vmem:[%s3 + $0x340] sm:$0xff]
    %v358 = vld [vmem:[%s3 + $0x348] sm:$0xff]
    %v359 = vld [vmem:[%s3 + $0x350] sm:$0xff]
    %v360 = vld [vmem:[%s3 + $0x358] sm:$0xff]
    %v361 = vld [vmem:[%s3 + $0x360] sm:$0xff]
    %v362 = vld [vmem:[%s3 + $0x368] sm:$0xff]
    %v363 = vld [vmem:[%s3 + $0x370] sm:$0xff]
    %v364 = vld [vmem:[%s3 + $0x378] sm:$0xff]
    %v365 = vld [vmem:[%s3 + $0x380] sm:$0xff]
    %v366 = vld [vmem:[%s3 + $0x388] sm:$0xff]
    %v367 = vld [vmem:[%s3 + $0x390] sm:$0xff]
    %v368 = vld [vmem:[%s3 + $0x398] sm:$0xff]
    %v369 = vld [vmem:[%s3 + $0x3a0] sm:$0xff]
    %v370 = vld [vmem:[%s3 + $0x3a8] sm:$0xff]
    %v371 = vld [vmem:[%s3 + $0x3b0] sm:$0xff]
    %v372 = vld [vmem:[%s3 + $0x3b8] sm:$0xff]
    %v373 = vld [vmem:[%s3 + $0x3c0] sm:$0xff]
    %v374 = vld [vmem:[%s3 + $0x3c8] sm:$0xff]
    %v375 = vld [vmem:[%s3 + $0x3d0] sm:$0xff]
    %v376 = vld [vmem:[%s3 + $0x3d8] sm:$0xff]
    %v377 = vld [vmem:[%s3 + $0x3e0] sm:$0xff]
    %v378 = vld [vmem:[%s3 + $0x3e8] sm:$0xff]
    %v379 = vld [vmem:[%s3 + $0x3f0] sm:$0xff]
    %v380 = vld [vmem:[%s3 + $0x3f8] sm:$0xff]
    %v381 = vld [vmem:[%s4] sm:$0xf]
    %v382 = vld [vmem:[#allocation2] sm:$0xf]
    %v383 = vld [vmem:[#allocation2 + $0x4] sm:$0xf]
    %v386 = vlaneseq
    %v387 = vshrl.u32 %v386, 7
    %v388 = vsub.s32 0, %v387
    %v389 = vrot.slane %v382, %v388
    %v390 = vlaneseq
    %v391 = vshrl.u32 %v390, 7
    %v392 = vsub.s32 1, %v391
    %v393 = vrot.slane %v382, %v392
    %v394 = vlaneseq
    %v395 = vshrl.u32 %v394, 7
    %v396 = vsub.s32 2, %v395
    %v397 = vrot.slane %v382, %v396
    %v398 = vlaneseq
    %v399 = vshrl.u32 %v398, 7
    %v400 = vsub.s32 3, %v399
    %v401 = vrot.slane %v382, %v400
    %v402 = vlaneseq
    %v403 = vshrl.u32 %v402, 7
    %v404 = vsub.s32 0, %v403
    %v405 = vrot.slane %v383, %v404
    %v406 = vlaneseq
    %v407 = vshrl.u32 %v406, 7
    %v408 = vsub.s32 1, %v407
    %v409 = vrot.slane %v383, %v408
    %v410 = vlaneseq
    %v411 = vshrl.u32 %v410, 7
    %v412 = vsub.s32 2, %v411
    %v413 = vrot.slane %v383, %v412
    %v414 = vlaneseq
    %v415 = vshrl.u32 %v414, 7
    %v416 = vsub.s32 3, %v415
    %v417 = vrot.slane %v383, %v416
    %v426 = vpack.c.bf16 %v389, %v389
    %v427 = vpack.c.bf16 %v393, %v393
    %v428 = vpack.c.bf16 %v397, %v397
    %v429 = vpack.c.bf16 %v401, %v401
    %v430 = vpack.c.bf16 %v405, %v405
    %v431 = vpack.c.bf16 %v409, %v409
    %v432 = vpack.c.bf16 %v413, %v413
    %v433 = vpack.c.bf16 %v417, %v417
    %v434 = vld [vmem:[#allocation3] sm:$0xf]
    %v435 = vld [vmem:[#allocation3 + $0x4] sm:$0xf]
    %v436 = vld [vmem:[#allocation3 + $0x8] sm:$0xf]
    %v437 = vld [vmem:[#allocation3 + $0xc] sm:$0xf]
    %v438 = vld [vmem:[#allocation3 + $0x10] sm:$0xf]
    %v439 = vld [vmem:[#allocation3 + $0x14] sm:$0xf]
    %v446 = vlaneseq
    %v447 = vshrl.u32 %v446, 7
    %v448 = vsub.s32 0, %v447
    %v449 = vrot.slane %v434, %v448
    %v450 = vlaneseq
    %v451 = vshrl.u32 %v450, 7
    %v452 = vsub.s32 1, %v451
    %v453 = vrot.slane %v434, %v452
    %v454 = vlaneseq
    %v455 = vshrl.u32 %v454, 7
    %v456 = vsub.s32 2, %v455
    %v457 = vrot.slane %v434, %v456
    %v458 = vlaneseq
    %v459 = vshrl.u32 %v458, 7
    %v460 = vsub.s32 3, %v459
    %v461 = vrot.slane %v434, %v460
    %v462 = vlaneseq
    %v463 = vshrl.u32 %v462, 7
    %v464 = vsub.s32 0, %v463
    %v465 = vrot.slane %v435, %v464
    %v466 = vlaneseq
    %v467 = vshrl.u32 %v466, 7
    %v468 = vsub.s32 1, %v467
    %v469 = vrot.slane %v435, %v468
    %v470 = vlaneseq
    %v471 = vshrl.u32 %v470, 7
    %v472 = vsub.s32 2, %v471
    %v473 = vrot.slane %v435, %v472
    %v474 = vlaneseq
    %v475 = vshrl.u32 %v474, 7
    %v476 = vsub.s32 3, %v475
    %v477 = vrot.slane %v435, %v476
    %v478 = vlaneseq
    %v479 = vshrl.u32 %v478, 7
    %v480 = vsub.s32 0, %v479
    %v481 = vrot.slane %v436, %v480
    %v482 = vlaneseq
    %v483 = vshrl.u32 %v482, 7
    %v484 = vsub.s32 1, %v483
    %v485 = vrot.slane %v436, %v484
    %v486 = vlaneseq
    %v487 = vshrl.u32 %v486, 7
    %v488 = vsub.s32 2, %v487
    %v489 = vrot.slane %v436, %v488
    %v490 = vlaneseq
    %v491 = vshrl.u32 %v490, 7
    %v492 = vsub.s32 3, %v491
    %v493 = vrot.slane %v436, %v492
    %v494 = vlaneseq
    %v495 = vshrl.u32 %v494, 7
    %v496 = vsub.s32 0, %v495
    %v497 = vrot.slane %v437, %v496
    %v498 = vlaneseq
    %v499 = vshrl.u32 %v498, 7
    %v500 = vsub.s32 1, %v499
    %v501 = vrot.slane %v437, %v500
    %v502 = vlaneseq
    %v503 = vshrl.u32 %v502, 7
    %v504 = vsub.s32 2, %v503
    %v505 = vrot.slane %v437, %v504
    %v506 = vlaneseq
    %v507 = vshrl.u32 %v506, 7
    %v508 = vsub.s32 3, %v507
    %v509 = vrot.slane %v437, %v508
    %v510 = vlaneseq
    %v511 = vshrl.u32 %v510, 7
    %v512 = vsub.s32 0, %v511
    %v513 = vrot.slane %v438, %v512
    %v514 = vlaneseq
    %v515 = vshrl.u32 %v514, 7
    %v516 = vsub.s32 1, %v515
    %v517 = vrot.slane %v438, %v516
    %v518 = vlaneseq
    %v519 = vshrl.u32 %v518, 7
    %v520 = vsub.s32 2, %v519
    %v521 = vrot.slane %v438, %v520
    %v522 = vlaneseq
    %v523 = vshrl.u32 %v522, 7
    %v524 = vsub.s32 3, %v523
    %v525 = vrot.slane %v438, %v524
    %v526 = vlaneseq
    %v527 = vshrl.u32 %v526, 7
    %v528 = vsub.s32 0, %v527
    %v529 = vrot.slane %v439, %v528
    %v530 = vlaneseq
    %v531 = vshrl.u32 %v530, 7
    %v532 = vsub.s32 1, %v531
    %v533 = vrot.slane %v439, %v532
    %v534 = vlaneseq
    %v535 = vshrl.u32 %v534, 7
    %v536 = vsub.s32 2, %v535
    %v537 = vrot.slane %v439, %v536
    %v538 = vlaneseq
    %v539 = vshrl.u32 %v538, 7
    %v540 = vsub.s32 3, %v539
    %v541 = vrot.slane %v439, %v540
    %v566 = vpack.c.bf16 %v449, %v449
    %v567 = vpack.c.bf16 %v453, %v453
    %v568 = vpack.c.bf16 %v457, %v457
    %v569 = vpack.c.bf16 %v461, %v461
    %v570 = vpack.c.bf16 %v465, %v465
    %v571 = vpack.c.bf16 %v469, %v469
    %v572 = vpack.c.bf16 %v473, %v473
    %v573 = vpack.c.bf16 %v477, %v477
    %v574 = vpack.c.bf16 %v481, %v481
    %v575 = vpack.c.bf16 %v485, %v485
    %v576 = vpack.c.bf16 %v489, %v489
    %v577 = vpack.c.bf16 %v493, %v493
    %v578 = vpack.c.bf16 %v497, %v497
    %v579 = vpack.c.bf16 %v501, %v501
    %v580 = vpack.c.bf16 %v505, %v505
    %v581 = vpack.c.bf16 %v509, %v509
    %v582 = vpack.c.bf16 %v513, %v513
    %v583 = vpack.c.bf16 %v517, %v517
    %v584 = vpack.c.bf16 %v521, %v521
    %v585 = vpack.c.bf16 %v525, %v525
    %v586 = vpack.c.bf16 %v529, %v529
    %v587 = vpack.c.bf16 %v533, %v533
    %v588 = vpack.c.bf16 %v537, %v537
    %v589 = vpack.c.bf16 %v541, %v541
    %v591 = vlaneseq
    %v592 = vshrl.u32 %v591, 7
    %v593 = vsub.s32 0, %v592
    %v594 = vrot.slane %v381, %v593
    %v595 = vlaneseq
    %v596 = vshrl.u32 %v595, 7
    %v597 = vsub.s32 1, %v596
    %v598 = vrot.slane %v381, %v597
    %v599 = vlaneseq
    %v600 = vshrl.u32 %v599, 7
    %v601 = vsub.s32 2, %v600
    %v602 = vrot.slane %v381, %v601
    %v603 = vlaneseq
    %v604 = vshrl.u32 %v603, 7
    %v605 = vsub.s32 3, %v604
    %v606 = vrot.slane %v381, %v605
    %v619 = vunpack.c.l.b16 %v426
    %v620 = vunpack.c.l.b16 %v427
    %v621 = vunpack.c.l.b16 %v428
    %v622 = vunpack.c.l.b16 %v429
    %v623 = vunpack.c.l.b16 %v430
    %v624 = vunpack.c.l.b16 %v431
    %v625 = vunpack.c.l.b16 %v432
    %v626 = vunpack.c.l.b16 %v433
    %v627 = vrot.slane %v623, 7
    %vm628 = vcmask 1041409
    %v629 = vsel %vm628, %v627, %v619
    %v630 = vrot.slane %v624, 7
    %v631 = vsel %vm628, %v630, %v620
    %v632 = vrot.slane %v625, 7
    %v633 = vsel %vm628, %v632, %v621
    %v634 = vrot.slane %v626, 7
    %v635 = vsel %vm628, %v634, %v622
    %v636 = vpack.c.b16 %v629, %v629
    %v637 = vpack.c.b16 %v631, %v631
    %v638 = vpack.c.b16 %v633, %v633
    %v639 = vpack.c.b16 %v635, %v635
    %v772 = vunpack.c.l.b16 %v253
    %v773 = vunpack.c.h.b16 %v253
    %v774 = vunpack.c.l.b16 %v254
    %v775 = vunpack.c.h.b16 %v254
    %v776 = vunpack.c.l.b16 %v255
    %v777 = vunpack.c.h.b16 %v255
    %v778 = vunpack.c.l.b16 %v256
    %v779 = vunpack.c.h.b16 %v256
    %v780 = vunpack.c.l.b16 %v257
    %v781 = vunpack.c.h.b16 %v257
    %v782 = vunpack.c.l.b16 %v258
    %v783 = vunpack.c.h.b16 %v258
    %v784 = vunpack.c.l.b16 %v259
    %v785 = vunpack.c.h.b16 %v259
    %v786 = vunpack.c.l.b16 %v260
    %v787 = vunpack.c.h.b16 %v260
    %v788 = vunpack.c.l.b16 %v261
    %v789 = vunpack.c.h.b16 %v261
    %v790 = vunpack.c.l.b16 %v262
    %v791 = vunpack.c.h.b16 %v262
    %v792 = vunpack.c.l.b16 %v263
    %v793 = vunpack.c.h.b16 %v263
    %v794 = vunpack.c.l.b16 %v264
    %v795 = vunpack.c.h.b16 %v264
    %v796 = vunpack.c.l.b16 %v265
    %v797 = vunpack.c.h.b16 %v265
    %v798 = vunpack.c.l.b16 %v266
    %v799 = vunpack.c.h.b16 %v266
    %v800 = vunpack.c.l.b16 %v267
    %v801 = vunpack.c.h.b16 %v267
    %v802 = vunpack.c.l.b16 %v268
    %v803 = vunpack.c.h.b16 %v268
    %v804 = vunpack.c.l.b16 %v269
    %v805 = vunpack.c.h.b16 %v269
    %v806 = vunpack.c.l.b16 %v270
    %v807 = vunpack.c.h.b16 %v270
    %v808 = vunpack.c.l.b16 %v271
    %v809 = vunpack.c.h.b16 %v271
    %v810 = vunpack.c.l.b16 %v272
    %v811 = vunpack.c.h.b16 %v272
    %v812 = vunpack.c.l.b16 %v273
    %v813 = vunpack.c.h.b16 %v273
    %v814 = vunpack.c.l.b16 %v274
    %v815 = vunpack.c.h.b16 %v274
    %v816 = vunpack.c.l.b16 %v275
    %v817 = vunpack.c.h.b16 %v275
    %v818 = vunpack.c.l.b16 %v276
    %v819 = vunpack.c.h.b16 %v276
    %v820 = vunpack.c.l.b16 %v277
    %v821 = vunpack.c.h.b16 %v277
    %v822 = vunpack.c.l.b16 %v278
    %v823 = vunpack.c.h.b16 %v278
    %v824 = vunpack.c.l.b16 %v279
    %v825 = vunpack.c.h.b16 %v279
    %v826 = vunpack.c.l.b16 %v280
    %v827 = vunpack.c.h.b16 %v280
    %v828 = vunpack.c.l.b16 %v281
    %v829 = vunpack.c.h.b16 %v281
    %v830 = vunpack.c.l.b16 %v282
    %v831 = vunpack.c.h.b16 %v282
    %v832 = vunpack.c.l.b16 %v283
    %v833 = vunpack.c.h.b16 %v283
    %v834 = vunpack.c.l.b16 %v284
    %v835 = vunpack.c.h.b16 %v284
    %v836 = vunpack.c.l.b16 %v285
    %v837 = vunpack.c.h.b16 %v285
    %v838 = vunpack.c.l.b16 %v286
    %v839 = vunpack.c.h.b16 %v286
    %v840 = vunpack.c.l.b16 %v287
    %v841 = vunpack.c.h.b16 %v287
    %v842 = vunpack.c.l.b16 %v288
    %v843 = vunpack.c.h.b16 %v288
    %v844 = vunpack.c.l.b16 %v289
    %v845 = vunpack.c.h.b16 %v289
    %v846 = vunpack.c.l.b16 %v290
    %v847 = vunpack.c.h.b16 %v290
    %v848 = vunpack.c.l.b16 %v291
    %v849 = vunpack.c.h.b16 %v291
    %v850 = vunpack.c.l.b16 %v292
    %v851 = vunpack.c.h.b16 %v292
    %v852 = vunpack.c.l.b16 %v293
    %v853 = vunpack.c.h.b16 %v293
    %v854 = vunpack.c.l.b16 %v294
    %v855 = vunpack.c.h.b16 %v294
    %v856 = vunpack.c.l.b16 %v295
    %v857 = vunpack.c.h.b16 %v295
    %v858 = vunpack.c.l.b16 %v296
    %v859 = vunpack.c.h.b16 %v296
    %v860 = vunpack.c.l.b16 %v297
    %v861 = vunpack.c.h.b16 %v297
    %v862 = vunpack.c.l.b16 %v298
    %v863 = vunpack.c.h.b16 %v298
    %v864 = vunpack.c.l.b16 %v299
    %v865 = vunpack.c.h.b16 %v299
    %v866 = vunpack.c.l.b16 %v300
    %v867 = vunpack.c.h.b16 %v300
    %v868 = vunpack.c.l.b16 %v301
    %v869 = vunpack.c.h.b16 %v301
    %v870 = vunpack.c.l.b16 %v302
    %v871 = vunpack.c.h.b16 %v302
    %v872 = vunpack.c.l.b16 %v303
    %v873 = vunpack.c.h.b16 %v303
    %v874 = vunpack.c.l.b16 %v304
    %v875 = vunpack.c.h.b16 %v304
    %v876 = vunpack.c.l.b16 %v305
    %v877 = vunpack.c.h.b16 %v305
    %v878 = vunpack.c.l.b16 %v306
    %v879 = vunpack.c.h.b16 %v306
    %v880 = vunpack.c.l.b16 %v307
    %v881 = vunpack.c.h.b16 %v307
    %v882 = vunpack.c.l.b16 %v308
    %v883 = vunpack.c.h.b16 %v308
    %v884 = vunpack.c.l.b16 %v309
    %v885 = vunpack.c.h.b16 %v309
    %v886 = vunpack.c.l.b16 %v310
    %v887 = vunpack.c.h.b16 %v310
    %v888 = vunpack.c.l.b16 %v311
    %v889 = vunpack.c.h.b16 %v311
    %v890 = vunpack.c.l.b16 %v312
    %v891 = vunpack.c.h.b16 %v312
    %v892 = vunpack.c.l.b16 %v313
    %v893 = vunpack.c.h.b16 %v313
    %v894 = vunpack.c.l.b16 %v314
    %v895 = vunpack.c.h.b16 %v314
    %v896 = vunpack.c.l.b16 %v315
    %v897 = vunpack.c.h.b16 %v315
    %v898 = vunpack.c.l.b16 %v316
    %v899 = vunpack.c.h.b16 %v316
    %v900 = vunpack.c.l.b16 %v317
    %v901 = vunpack.c.h.b16 %v317
    %v902 = vunpack.c.l.b16 %v318
    %v903 = vunpack.c.h.b16 %v318
    %v904 = vunpack.c.l.b16 %v319
    %v905 = vunpack.c.h.b16 %v319
    %v906 = vunpack.c.l.b16 %v320
    %v907 = vunpack.c.h.b16 %v320
    %v908 = vunpack.c.l.b16 %v321
    %v909 = vunpack.c.h.b16 %v321
    %v910 = vunpack.c.l.b16 %v322
    %v911 = vunpack.c.h.b16 %v322
    %v912 = vunpack.c.l.b16 %v323
    %v913 = vunpack.c.h.b16 %v323
    %v914 = vunpack.c.l.b16 %v324
    %v915 = vunpack.c.h.b16 %v324
    %v916 = vunpack.c.l.b16 %v325
    %v917 = vunpack.c.h.b16 %v325
    %v918 = vunpack.c.l.b16 %v326
    %v919 = vunpack.c.h.b16 %v326
    %v920 = vunpack.c.l.b16 %v327
    %v921 = vunpack.c.h.b16 %v327
    %v922 = vunpack.c.l.b16 %v328
    %v923 = vunpack.c.h.b16 %v328
    %v924 = vunpack.c.l.b16 %v329
    %v925 = vunpack.c.h.b16 %v329
    %v926 = vunpack.c.l.b16 %v330
    %v927 = vunpack.c.h.b16 %v330
    %v928 = vunpack.c.l.b16 %v331
    %v929 = vunpack.c.h.b16 %v331
    %v930 = vunpack.c.l.b16 %v332
    %v931 = vunpack.c.h.b16 %v332
    %v932 = vunpack.c.l.b16 %v333
    %v933 = vunpack.c.h.b16 %v333
    %v934 = vunpack.c.l.b16 %v334
    %v935 = vunpack.c.h.b16 %v334
    %v936 = vunpack.c.l.b16 %v335
    %v937 = vunpack.c.h.b16 %v335
    %v938 = vunpack.c.l.b16 %v336
    %v939 = vunpack.c.h.b16 %v336
    %v940 = vunpack.c.l.b16 %v337
    %v941 = vunpack.c.h.b16 %v337
    %v942 = vunpack.c.l.b16 %v338
    %v943 = vunpack.c.h.b16 %v338
    %v944 = vunpack.c.l.b16 %v339
    %v945 = vunpack.c.h.b16 %v339
    %v946 = vunpack.c.l.b16 %v340
    %v947 = vunpack.c.h.b16 %v340
    %v948 = vunpack.c.l.b16 %v341
    %v949 = vunpack.c.h.b16 %v341
    %v950 = vunpack.c.l.b16 %v342
    %v951 = vunpack.c.h.b16 %v342
    %v952 = vunpack.c.l.b16 %v343
    %v953 = vunpack.c.h.b16 %v343
    %v954 = vunpack.c.l.b16 %v344
    %v955 = vunpack.c.h.b16 %v344
    %v956 = vunpack.c.l.b16 %v345
    %v957 = vunpack.c.h.b16 %v345
    %v958 = vunpack.c.l.b16 %v346
    %v959 = vunpack.c.h.b16 %v346
    %v960 = vunpack.c.l.b16 %v347
    %v961 = vunpack.c.h.b16 %v347
    %v962 = vunpack.c.l.b16 %v348
    %v963 = vunpack.c.h.b16 %v348
    %v964 = vunpack.c.l.b16 %v349
    %v965 = vunpack.c.h.b16 %v349
    %v966 = vunpack.c.l.b16 %v350
    %v967 = vunpack.c.h.b16 %v350
    %v968 = vunpack.c.l.b16 %v351
    %v969 = vunpack.c.h.b16 %v351
    %v970 = vunpack.c.l.b16 %v352
    %v971 = vunpack.c.h.b16 %v352
    %v972 = vunpack.c.l.b16 %v353
    %v973 = vunpack.c.h.b16 %v353
    %v974 = vunpack.c.l.b16 %v354
    %v975 = vunpack.c.h.b16 %v354
    %v976 = vunpack.c.l.b16 %v355
    %v977 = vunpack.c.h.b16 %v355
    %v978 = vunpack.c.l.b16 %v356
    %v979 = vunpack.c.h.b16 %v356
    %v980 = vunpack.c.l.b16 %v357
    %v981 = vunpack.c.h.b16 %v357
    %v982 = vunpack.c.l.b16 %v358
    %v983 = vunpack.c.h.b16 %v358
    %v984 = vunpack.c.l.b16 %v359
    %v985 = vunpack.c.h.b16 %v359
    %v986 = vunpack.c.l.b16 %v360
    %v987 = vunpack.c.h.b16 %v360
    %v988 = vunpack.c.l.b16 %v361
    %v989 = vunpack.c.h.b16 %v361
    %v990 = vunpack.c.l.b16 %v362
    %v991 = vunpack.c.h.b16 %v362
    %v992 = vunpack.c.l.b16 %v363
    %v993 = vunpack.c.h.b16 %v363
    %v994 = vunpack.c.l.b16 %v364
    %v995 = vunpack.c.h.b16 %v364
    %v996 = vunpack.c.l.b16 %v365
    %v997 = vunpack.c.h.b16 %v365
    %v998 = vunpack.c.l.b16 %v366
    %v999 = vunpack.c.h.b16 %v366
    %v1000 = vunpack.c.l.b16 %v367
    %v1001 = vunpack.c.h.b16 %v367
    %v1002 = vunpack.c.l.b16 %v368
    %v1003 = vunpack.c.h.b16 %v368
    %v1004 = vunpack.c.l.b16 %v369
    %v1005 = vunpack.c.h.b16 %v369
    %v1006 = vunpack.c.l.b16 %v370
    %v1007 = vunpack.c.h.b16 %v370
    %v1008 = vunpack.c.l.b16 %v371
    %v1009 = vunpack.c.h.b16 %v371
    %v1010 = vunpack.c.l.b16 %v372
    %v1011 = vunpack.c.h.b16 %v372
    %v1012 = vunpack.c.l.b16 %v373
    %v1013 = vunpack.c.h.b16 %v373
    %v1014 = vunpack.c.l.b16 %v374
    %v1015 = vunpack.c.h.b16 %v374
    %v1016 = vunpack.c.l.b16 %v375
    %v1017 = vunpack.c.h.b16 %v375
    %v1018 = vunpack.c.l.b16 %v376
    %v1019 = vunpack.c.h.b16 %v376
    %v1020 = vunpack.c.l.b16 %v377
    %v1021 = vunpack.c.h.b16 %v377
    %v1022 = vunpack.c.l.b16 %v378
    %v1023 = vunpack.c.h.b16 %v378
    %v1024 = vunpack.c.l.b16 %v379
    %v1025 = vunpack.c.h.b16 %v379
    %v1026 = vunpack.c.l.b16 %v380
    %v1027 = vunpack.c.h.b16 %v380
    %v1028 = vpack.c.b16 %v776, %v772
    %v1029 = vpack.c.b16 %v777, %v773
    %v1030 = vpack.c.b16 %v778, %v774
    %v1031 = vpack.c.b16 %v779, %v775
    %v1032 = vpack.c.b16 %v784, %v780
    %v1033 = vpack.c.b16 %v785, %v781
    %v1034 = vpack.c.b16 %v786, %v782
    %v1035 = vpack.c.b16 %v787, %v783
    %v1036 = vpack.c.b16 %v792, %v788
    %v1037 = vpack.c.b16 %v793, %v789
    %v1038 = vpack.c.b16 %v794, %v790
    %v1039 = vpack.c.b16 %v795, %v791
    %v1040 = vpack.c.b16 %v800, %v796
    %v1041 = vpack.c.b16 %v801, %v797
    %v1042 = vpack.c.b16 %v802, %v798
    %v1043 = vpack.c.b16 %v803, %v799
    %v1044 = vpack.c.b16 %v808, %v804
    %v1045 = vpack.c.b16 %v809, %v805
    %v1046 = vpack.c.b16 %v810, %v806
    %v1047 = vpack.c.b16 %v811, %v807
    %v1048 = vpack.c.b16 %v816, %v812
    %v1049 = vpack.c.b16 %v817, %v813
    %v1050 = vpack.c.b16 %v818, %v814
    %v1051 = vpack.c.b16 %v819, %v815
    %v1052 = vpack.c.b16 %v824, %v820
    %v1053 = vpack.c.b16 %v825, %v821
    %v1054 = vpack.c.b16 %v826, %v822
    %v1055 = vpack.c.b16 %v827, %v823
    %v1056 = vpack.c.b16 %v832, %v828
    %v1057 = vpack.c.b16 %v833, %v829
    %v1058 = vpack.c.b16 %v834, %v830
    %v1059 = vpack.c.b16 %v835, %v831
    %v1060 = vpack.c.b16 %v840, %v836
    %v1061 = vpack.c.b16 %v841, %v837
    %v1062 = vpack.c.b16 %v842, %v838
    %v1063 = vpack.c.b16 %v843, %v839
    %v1064 = vpack.c.b16 %v848, %v844
    %v1065 = vpack.c.b16 %v849, %v845
    %v1066 = vpack.c.b16 %v850, %v846
    %v1067 = vpack.c.b16 %v851, %v847
    %v1068 = vpack.c.b16 %v856, %v852
    %v1069 = vpack.c.b16 %v857, %v853
    %v1070 = vpack.c.b16 %v858, %v854
    %v1071 = vpack.c.b16 %v859, %v855
    %v1072 = vpack.c.b16 %v864, %v860
    %v1073 = vpack.c.b16 %v865, %v861
    %v1074 = vpack.c.b16 %v866, %v862
    %v1075 = vpack.c.b16 %v867, %v863
    %v1076 = vpack.c.b16 %v872, %v868
    %v1077 = vpack.c.b16 %v873, %v869
    %v1078 = vpack.c.b16 %v874, %v870
    %v1079 = vpack.c.b16 %v875, %v871
    %v1080 = vpack.c.b16 %v880, %v876
    %v1081 = vpack.c.b16 %v881, %v877
    %v1082 = vpack.c.b16 %v882, %v878
    %v1083 = vpack.c.b16 %v883, %v879
    %v1084 = vpack.c.b16 %v888, %v884
    %v1085 = vpack.c.b16 %v889, %v885
    %v1086 = vpack.c.b16 %v890, %v886
    %v1087 = vpack.c.b16 %v891, %v887
    %v1088 = vpack.c.b16 %v896, %v892
    %v1089 = vpack.c.b16 %v897, %v893
    %v1090 = vpack.c.b16 %v898, %v894
    %v1091 = vpack.c.b16 %v899, %v895
    %v1092 = vpack.c.b16 %v904, %v900
    %v1093 = vpack.c.b16 %v905, %v901
    %v1094 = vpack.c.b16 %v906, %v902
    %v1095 = vpack.c.b16 %v907, %v903
    %v1096 = vpack.c.b16 %v912, %v908
    %v1097 = vpack.c.b16 %v913, %v909
    %v1098 = vpack.c.b16 %v914, %v910
    %v1099 = vpack.c.b16 %v915, %v911
    %v1100 = vpack.c.b16 %v920, %v916
    %v1101 = vpack.c.b16 %v921, %v917
    %v1102 = vpack.c.b16 %v922, %v918
    %v1103 = vpack.c.b16 %v923, %v919
    %v1104 = vpack.c.b16 %v928, %v924
    %v1105 = vpack.c.b16 %v929, %v925
    %v1106 = vpack.c.b16 %v930, %v926
    %v1107 = vpack.c.b16 %v931, %v927
    %v1108 = vpack.c.b16 %v936, %v932
    %v1109 = vpack.c.b16 %v937, %v933
    %v1110 = vpack.c.b16 %v938, %v934
    %v1111 = vpack.c.b16 %v939, %v935
    %v1112 = vpack.c.b16 %v944, %v940
    %v1113 = vpack.c.b16 %v945, %v941
    %v1114 = vpack.c.b16 %v946, %v942
    %v1115 = vpack.c.b16 %v947, %v943
    %v1116 = vpack.c.b16 %v952, %v948
    %v1117 = vpack.c.b16 %v953, %v949
    %v1118 = vpack.c.b16 %v954, %v950
    %v1119 = vpack.c.b16 %v955, %v951
    %v1120 = vpack.c.b16 %v960, %v956
    %v1121 = vpack.c.b16 %v961, %v957
    %v1122 = vpack.c.b16 %v962, %v958
    %v1123 = vpack.c.b16 %v963, %v959
    %v1124 = vpack.c.b16 %v968, %v964
    %v1125 = vpack.c.b16 %v969, %v965
    %v1126 = vpack.c.b16 %v970, %v966
    %v1127 = vpack.c.b16 %v971, %v967
    %v1128 = vpack.c.b16 %v976, %v972
    %v1129 = vpack.c.b16 %v977, %v973
    %v1130 = vpack.c.b16 %v978, %v974
    %v1131 = vpack.c.b16 %v979, %v975
    %v1132 = vpack.c.b16 %v984, %v980
    %v1133 = vpack.c.b16 %v985, %v981
    %v1134 = vpack.c.b16 %v986, %v982
    %v1135 = vpack.c.b16 %v987, %v983
    %v1136 = vpack.c.b16 %v992, %v988
    %v1137 = vpack.c.b16 %v993, %v989
    %v1138 = vpack.c.b16 %v994, %v990
    %v1139 = vpack.c.b16 %v995, %v991
    %v1140 = vpack.c.b16 %v1000, %v996
    %v1141 = vpack.c.b16 %v1001, %v997
    %v1142 = vpack.c.b16 %v1002, %v998
    %v1143 = vpack.c.b16 %v1003, %v999
    %v1144 = vpack.c.b16 %v1008, %v1004
    %v1145 = vpack.c.b16 %v1009, %v1005
    %v1146 = vpack.c.b16 %v1010, %v1006
    %v1147 = vpack.c.b16 %v1011, %v1007
    %v1148 = vpack.c.b16 %v1016, %v1012
    %v1149 = vpack.c.b16 %v1017, %v1013
    %v1150 = vpack.c.b16 %v1018, %v1014
    %v1151 = vpack.c.b16 %v1019, %v1015
    %v1152 = vpack.c.b16 %v1024, %v1020
    %v1153 = vpack.c.b16 %v1025, %v1021
    %v1154 = vpack.c.b16 %v1026, %v1022
    %v1155 = vpack.c.b16 %v1027, %v1023
    %1284 = vmatprep.subr.bf16.mxu0 %v1029
    %1285 = vmatpush1.bf16.msra.mxu0 %v1028
    %1286 = vmatprep.subr.bf16.mxu0 %v1033
    %1287 = vmatpush1.bf16.msra.mxu0 %v1032
    %1288 = vmatprep.subr.bf16.mxu0 %v1037
    %1289 = vmatpush1.bf16.msra.mxu0 %v1036
    %1290 = vmatprep.subr.bf16.mxu0 %v1041
    %1291 = vmatpush1.bf16.msra.mxu0 %v1040
    %1292 = vmatprep.subr.bf16.mxu0 %v1045
    %1293 = vmatpush1.bf16.msra.mxu0 %v1044
    %1294 = vmatprep.subr.bf16.mxu0 %v1049
    %1295 = vmatpush1.bf16.msra.mxu0 %v1048
    %1296 = vmatprep.subr.bf16.mxu0 %v1053
    %1297 = vmatpush1.bf16.msra.mxu0 %v1052
    %1298 = vmatprep.subr.bf16.mxu0 %v1057
    %1299 = vmatpush1.bf16.msra.mxu0 %v1056
    %1300 = vmatprep.subr.bf16.mxu0 %v1061
    %1301 = vmatpush1.bf16.msra.mxu0 %v1060
    %1302 = vmatprep.subr.bf16.mxu0 %v1065
    %1303 = vmatpush1.bf16.msra.mxu0 %v1064
    %1304 = vmatprep.subr.bf16.mxu0 %v1069
    %1305 = vmatpush1.bf16.msra.mxu0 %v1068
    %1306 = vmatprep.subr.bf16.mxu0 %v1073
    %1307 = vmatpush1.bf16.msra.mxu0 %v1072
    %1308 = vmatprep.subr.bf16.mxu0 %v1077
    %1309 = vmatpush1.bf16.msra.mxu0 %v1076
    %1310 = vmatprep.subr.bf16.mxu0 %v1081
    %1311 = vmatpush1.bf16.msra.mxu0 %v1080
    %1312 = vmatprep.subr.bf16.mxu0 %v1085
    %1313 = vmatpush1.bf16.msra.mxu0 %v1084
    %1314 = vmatprep.subr.bf16.mxu0 %v1089
    %1315 = vmatpush1.bf16.msra.mxu0 %v1088
    %1316 = vmatprep.mubr.bf16.mxu0 %v637
    %1317 = vmatmul.mubr.bf16.gmra.mrb[0].mxu0 %v636
    %v1318 = vpop.f32.mrb[0].mxu0
    %v1319 = vadd.f32 %v594, %v1318
    %v1320 = vpop.f32.mrb[0].mxu0
    %v1321 = vadd.f32 %v598, %v1320
    %v1322 = vpop.f32.mrb[0].mxu0
    %v1323 = vpop.f32.mrb[0].mxu0
    %1324 = vdwg.mxu0
    %1325 = vmatprep.subr.bf16.mxu0 %v1093
    %1326 = vmatpush1.bf16.msra.mxu0 %v1092
    %1327 = vmatprep.subr.bf16.mxu0 %v1097
    %1328 = vmatpush1.bf16.msra.mxu0 %v1096
    %1329 = vmatprep.subr.bf16.mxu0 %v1101
    %1330 = vmatpush1.bf16.msra.mxu0 %v1100
    %1331 = vmatprep.subr.bf16.mxu0 %v1105
    %1332 = vmatpush1.bf16.msra.mxu0 %v1104
    %1333 = vmatprep.subr.bf16.mxu0 %v1109
    %1334 = vmatpush1.bf16.msra.mxu0 %v1108
    %1335 = vmatprep.subr.bf16.mxu0 %v1113
    %1336 = vmatpush1.bf16.msra.mxu0 %v1112
    %1337 = vmatprep.subr.bf16.mxu0 %v1117
    %1338 = vmatpush1.bf16.msra.mxu0 %v1116
    %1339 = vmatprep.subr.bf16.mxu0 %v1121
    %1340 = vmatpush1.bf16.msra.mxu0 %v1120
    %1341 = vmatprep.subr.bf16.mxu0 %v1125
    %1342 = vmatpush1.bf16.msra.mxu0 %v1124
    %1343 = vmatprep.subr.bf16.mxu0 %v1129
    %1344 = vmatpush1.bf16.msra.mxu0 %v1128
    %1345 = vmatprep.subr.bf16.mxu0 %v1133
    %1346 = vmatpush1.bf16.msra.mxu0 %v1132
    %1347 = vmatprep.subr.bf16.mxu0 %v1137
    %1348 = vmatpush1.bf16.msra.mxu0 %v1136
    %1349 = vmatprep.subr.bf16.mxu0 %v1141
    %1350 = vmatpush1.bf16.msra.mxu0 %v1140
    %1351 = vmatprep.subr.bf16.mxu0 %v1145
    %1352 = vmatpush1.bf16.msra.mxu0 %v1144
    %1353 = vmatprep.subr.bf16.mxu0 %v1149
    %1354 = vmatpush1.bf16.msra.mxu0 %v1148
    %1355 = vmatprep.subr.bf16.mxu0 %v1153
    %1356 = vmatpush1.bf16.msra.mxu0 %v1152
    %1357 = vmatprep.mubr.bf16.mxu0 %v639
    %1358 = vmatmul.mubr.bf16.gmra.mrb[0].mxu0 %v638
    %v1359 = vpop.f32.mrb[0].mxu0
    %v1360 = vadd.f32 %v1319, %v1359
    %v1361 = vpop.f32.mrb[0].mxu0
    %v1362 = vadd.f32 %v1321, %v1361
    %v1363 = vpop.f32.mrb[0].mxu0
    %v1364 = vpop.f32.mrb[0].mxu0
    %1365 = vdwg.mxu0
    %1366 = vmatprep.subr.bf16.mxu0 %v1031
    %1367 = vmatpush1.bf16.msra.mxu0 %v1030
    %1368 = vmatprep.subr.bf16.mxu0 %v1035
    %1369 = vmatpush1.bf16.msra.mxu0 %v1034
    %1370 = vmatprep.subr.bf16.mxu0 %v1039
    %1371 = vmatpush1.bf16.msra.mxu0 %v1038
    %1372 = vmatprep.subr.bf16.mxu0 %v1043
    %1373 = vmatpush1.bf16.msra.mxu0 %v1042
    %1374 = vmatprep.subr.bf16.mxu0 %v1047
    %1375 = vmatpush1.bf16.msra.mxu0 %v1046
    %1376 = vmatprep.subr.bf16.mxu0 %v1051
    %1377 = vmatpush1.bf16.msra.mxu0 %v1050
    %1378 = vmatprep.subr.bf16.mxu0 %v1055
    %1379 = vmatpush1.bf16.msra.mxu0 %v1054
    %1380 = vmatprep.subr.bf16.mxu0 %v1059
    %1381 = vmatpush1.bf16.msra.mxu0 %v1058
    %1382 = vmatprep.subr.bf16.mxu0 %v1063
    %1383 = vmatpush1.bf16.msra.mxu0 %v1062
    %1384 = vmatprep.subr.bf16.mxu0 %v1067
    %1385 = vmatpush1.bf16.msra.mxu0 %v1066
    %1386 = vmatprep.subr.bf16.mxu0 %v1071
    %1387 = vmatpush1.bf16.msra.mxu0 %v1070
    %1388 = vmatprep.subr.bf16.mxu0 %v1075
    %1389 = vmatpush1.bf16.msra.mxu0 %v1074
    %1390 = vmatprep.subr.bf16.mxu0 %v1079
    %1391 = vmatpush1.bf16.msra.mxu0 %v1078
    %1392 = vmatprep.subr.bf16.mxu0 %v1083
    %1393 = vmatpush1.bf16.msra.mxu0 %v1082
    %1394 = vmatprep.subr.bf16.mxu0 %v1087
    %1395 = vmatpush1.bf16.msra.mxu0 %v1086
    %1396 = vmatprep.subr.bf16.mxu0 %v1091
    %1397 = vmatpush1.bf16.msra.mxu0 %v1090
    %1398 = vmatprep.mubr.bf16.mxu0 %v637
    %1399 = vmatmul.mubr.bf16.gmra.mrb[0].mxu0 %v636
    %v1400 = vpop.f32.mrb[0].mxu0
    %v1401 = vadd.f32 %v602, %v1400
    %v1402 = vpop.f32.mrb[0].mxu0
    %v1403 = vadd.f32 %v606, %v1402
    %v1404 = vpop.f32.mrb[0].mxu0
    %v1405 = vpop.f32.mrb[0].mxu0
    %1406 = vdwg.mxu0
    %1407 = vmatprep.subr.bf16.mxu0 %v1095
    %1408 = vmatpush1.bf16.msra.mxu0 %v1094
    %1409 = vmatprep.subr.bf16.mxu0 %v1099
    %1410 = vmatpush1.bf16.msra.mxu0 %v1098
    %1411 = vmatprep.subr.bf16.mxu0 %v1103
    %1412 = vmatpush1.bf16.msra.mxu0 %v1102
    %1413 = vmatprep.subr.bf16.mxu0 %v1107
    %1414 = vmatpush1.bf16.msra.mxu0 %v1106
    %1415 = vmatprep.subr.bf16.mxu0 %v1111
    %1416 = vmatpush1.bf16.msra.mxu0 %v1110
    %1417 = vmatprep.subr.bf16.mxu0 %v1115
    %1418 = vmatpush1.bf16.msra.mxu0 %v1114
    %1419 = vmatprep.subr.bf16.mxu0 %v1119
    %1420 = vmatpush1.bf16.msra.mxu0 %v1118
    %1421 = vmatprep.subr.bf16.mxu0 %v1123
    %1422 = vmatpush1.bf16.msra.mxu0 %v1122
    %1423 = vmatprep.subr.bf16.mxu0 %v1127
    %1424 = vmatpush1.bf16.msra.mxu0 %v1126
    %1425 = vmatprep.subr.bf16.mxu0 %v1131
    %1426 = vmatpush1.bf16.msra.mxu0 %v1130
    %1427 = vmatprep.subr.bf16.mxu0 %v1135
    %1428 = vmatpush1.bf16.msra.mxu0 %v1134
    %1429 = vmatprep.subr.bf16.mxu0 %v1139
    %1430 = vmatpush1.bf16.msra.mxu0 %v1138
    %1431 = vmatprep.subr.bf16.mxu0 %v1143
    %1432 = vmatpush1.bf16.msra.mxu0 %v1142
    %1433 = vmatprep.subr.bf16.mxu0 %v1147
    %1434 = vmatpush1.bf16.msra.mxu0 %v1146
    %1435 = vmatprep.subr.bf16.mxu0 %v1151
    %1436 = vmatpush1.bf16.msra.mxu0 %v1150
    %1437 = vmatprep.subr.bf16.mxu0 %v1155
    %1438 = vmatpush1.bf16.msra.mxu0 %v1154
    %1439 = vmatprep.mubr.bf16.mxu0 %v639
    %1440 = vmatmul.mubr.bf16.gmra.mrb[0].mxu0 %v638
    %v1441 = vpop.f32.mrb[0].mxu0
    %v1442 = vadd.f32 %v1401, %v1441
    %v1443 = vpop.f32.mrb[0].mxu0
    %v1444 = vadd.f32 %v1403, %v1443
    %v1445 = vpop.f32.mrb[0].mxu0
    %v1446 = vpop.f32.mrb[0].mxu0
    %1447 = vdwg.mxu0
    %v1448 = vtanh.pop %v1360
    %v1449 = vtanh.pop %v1362
    %v1450 = vtanh.pop %v1442
    %v1451 = vtanh.pop %v1444
    %v1476 = vunpack.c.l.b16 %v566
    %v1477 = vunpack.c.l.b16 %v567
    %v1478 = vunpack.c.l.b16 %v568
    %v1479 = vunpack.c.l.b16 %v569
    %v1480 = vunpack.c.l.b16 %v570
    %v1481 = vunpack.c.l.b16 %v571
    %v1482 = vunpack.c.l.b16 %v572
    %v1483 = vunpack.c.l.b16 %v573
    %v1484 = vunpack.c.l.b16 %v574
    %v1485 = vunpack.c.l.b16 %v575
    %v1486 = vunpack.c.l.b16 %v576
    %v1487 = vunpack.c.l.b16 %v577
    %v1488 = vunpack.c.l.b16 %v578
    %v1489 = vunpack.c.l.b16 %v579
    %v1490 = vunpack.c.l.b16 %v580
    %v1491 = vunpack.c.l.b16 %v581
    %v1492 = vunpack.c.l.b16 %v582
    %v1493 = vunpack.c.l.b16 %v583
    %v1494 = vunpack.c.l.b16 %v584
    %v1495 = vunpack.c.l.b16 %v585
    %v1496 = vunpack.c.l.b16 %v586
    %v1497 = vunpack.c.l.b16 %v587
    %v1498 = vunpack.c.l.b16 %v588
    %v1499 = vunpack.c.l.b16 %v589
    %v1500 = vrot.slane %v1480, 7
    %v1501 = vsel %vm628, %v1500, %v1476
    %v1502 = vrot.slane %v1484, 6
    %vm1503 = vcmask 1042434
    %v1504 = vsel %vm1503, %v1502, %v1501
    %v1505 = vrot.slane %v1488, 5
    %vm1506 = vcmask 1043459
    %v1507 = vsel %vm1506, %v1505, %v1504
    %v1508 = vrot.slane %v1492, 4
    %vm1509 = vcmask 1044484
    %v1510 = vsel %vm1509, %v1508, %v1507
    %v1511 = vrot.slane %v1496, 3
    %vm1512 = vcmask 1045509
    %v1513 = vsel %vm1512, %v1511, %v1510
    %v1514 = vrot.slane %v1481, 7
    %v1515 = vsel %vm628, %v1514, %v1477
    %v1516 = vrot.slane %v1485, 6
    %v1517 = vsel %vm1503, %v1516, %v1515
    %v1518 = vrot.slane %v1489, 5
    %v1519 = vsel %vm1506, %v1518, %v1517
    %v1520 = vrot.slane %v1493, 4
    %v1521 = vsel %vm1509, %v1520, %v1519
    %v1522 = vrot.slane %v1497, 3
    %v1523 = vsel %vm1512, %v1522, %v1521
    %v1524 = vrot.slane %v1482, 7
    %v1525 = vsel %vm628, %v1524, %v1478
    %v1526 = vrot.slane %v1486, 6
    %v1527 = vsel %vm1503, %v1526, %v1525
    %v1528 = vrot.slane %v1490, 5
    %v1529 = vsel %vm1506, %v1528, %v1527
    %v1530 = vrot.slane %v1494, 4
    %v1531 = vsel %vm1509, %v1530, %v1529
    %v1532 = vrot.slane %v1498, 3
    %v1533 = vsel %vm1512, %v1532, %v1531
    %v1534 = vrot.slane %v1483, 7
    %v1535 = vsel %vm628, %v1534, %v1479
    %v1536 = vrot.slane %v1487, 6
    %v1537 = vsel %vm1503, %v1536, %v1535
    %v1538 = vrot.slane %v1491, 5
    %v1539 = vsel %vm1506, %v1538, %v1537
    %v1540 = vrot.slane %v1495, 4
    %v1541 = vsel %vm1509, %v1540, %v1539
    %v1542 = vrot.slane %v1499, 3
    %v1543 = vsel %vm1512, %v1542, %v1541
    %v1544 = vpack.c.b16 %v1513, %v1513
    %v1545 = vpack.c.b16 %v1523, %v1523
    %v1546 = vpack.c.b16 %v1533, %v1533
    %v1547 = vpack.c.b16 %v1543, %v1543
    %1552 = vmatprep.subr.bf16.mxu0 %v1029
    %1553 = vmatpush1.bf16.msra.mxu0 %v1028
    %1554 = vmatprep.subr.bf16.mxu0 %v1033
    %1555 = vmatpush1.bf16.msra.mxu0 %v1032
    %1556 = vmatprep.subr.bf16.mxu0 %v1037
    %1557 = vmatpush1.bf16.msra.mxu0 %v1036
    %1558 = vmatprep.subr.bf16.mxu0 %v1041
    %1559 = vmatpush1.bf16.msra.mxu0 %v1040
    %1560 = vmatprep.subr.bf16.mxu0 %v1045
    %1561 = vmatpush1.bf16.msra.mxu0 %v1044
    %1562 = vmatprep.subr.bf16.mxu0 %v1049
    %1563 = vmatpush1.bf16.msra.mxu0 %v1048
    %1564 = vmatprep.subr.bf16.mxu0 %v1053
    %1565 = vmatpush1.bf16.msra.mxu0 %v1052
    %1566 = vmatprep.subr.bf16.mxu0 %v1057
    %1567 = vmatpush1.bf16.msra.mxu0 %v1056
    %1568 = vmatprep.subr.bf16.mxu0 %v1061
    %1569 = vmatpush1.bf16.msra.mxu0 %v1060
    %1570 = vmatprep.subr.bf16.mxu0 %v1065
    %1571 = vmatpush1.bf16.msra.mxu0 %v1064
    %1572 = vmatprep.subr.bf16.mxu0 %v1069
    %1573 = vmatpush1.bf16.msra.mxu0 %v1068
    %1574 = vmatprep.subr.bf16.mxu0 %v1073
    %1575 = vmatpush1.bf16.msra.mxu0 %v1072
    %1576 = vmatprep.subr.bf16.mxu0 %v1077
    %1577 = vmatpush1.bf16.msra.mxu0 %v1076
    %1578 = vmatprep.subr.bf16.mxu0 %v1081
    %1579 = vmatpush1.bf16.msra.mxu0 %v1080
    %1580 = vmatprep.subr.bf16.mxu0 %v1085
    %1581 = vmatpush1.bf16.msra.mxu0 %v1084
    %1582 = vmatprep.subr.bf16.mxu0 %v1089
    %1583 = vmatpush1.bf16.msra.mxu0 %v1088
    %1584 = vmatprep.mubr.bf16.mxu0 %v1545
    %1585 = vmatmul.mubr.bf16.gmra.mrb[0].mxu0 %v1544
    %v1586 = vpop.f32.mrb[0].mxu0
    %v1587 = vadd.f32 %v594, %v1586
    %v1588 = vpop.f32.mrb[0].mxu0
    %v1589 = vadd.f32 %v598, %v1588
    %v1590 = vpop.f32.mrb[0].mxu0
    %v1591 = vpop.f32.mrb[0].mxu0
    %1592 = vdwg.mxu0
    %1593 = vmatprep.subr.bf16.mxu0 %v1093
    %1594 = vmatpush1.bf16.msra.mxu0 %v1092
    %1595 = vmatprep.subr.bf16.mxu0 %v1097
    %1596 = vmatpush1.bf16.msra.mxu0 %v1096
    %1597 = vmatprep.subr.bf16.mxu0 %v1101
    %1598 = vmatpush1.bf16.msra.mxu0 %v1100
    %1599 = vmatprep.subr.bf16.mxu0 %v1105
    %1600 = vmatpush1.bf16.msra.mxu0 %v1104
    %1601 = vmatprep.subr.bf16.mxu0 %v1109
    %1602 = vmatpush1.bf16.msra.mxu0 %v1108
    %1603 = vmatprep.subr.bf16.mxu0 %v1113
    %1604 = vmatpush1.bf16.msra.mxu0 %v1112
    %1605 = vmatprep.subr.bf16.mxu0 %v1117
    %1606 = vmatpush1.bf16.msra.mxu0 %v1116
    %1607 = vmatprep.subr.bf16.mxu0 %v1121
    %1608 = vmatpush1.bf16.msra.mxu0 %v1120
    %1609 = vmatprep.subr.bf16.mxu0 %v1125
    %1610 = vmatpush1.bf16.msra.mxu0 %v1124
    %1611 = vmatprep.subr.bf16.mxu0 %v1129
    %1612 = vmatpush1.bf16.msra.mxu0 %v1128
    %1613 = vmatprep.subr.bf16.mxu0 %v1133
    %1614 = vmatpush1.bf16.msra.mxu0 %v1132
    %1615 = vmatprep.subr.bf16.mxu0 %v1137
    %1616 = vmatpush1.bf16.msra.mxu0 %v1136
    %1617 = vmatprep.subr.bf16.mxu0 %v1141
    %1618 = vmatpush1.bf16.msra.mxu0 %v1140
    %1619 = vmatprep.subr.bf16.mxu0 %v1145
    %1620 = vmatpush1.bf16.msra.mxu0 %v1144
    %1621 = vmatprep.subr.bf16.mxu0 %v1149
    %1622 = vmatpush1.bf16.msra.mxu0 %v1148
    %1623 = vmatprep.subr.bf16.mxu0 %v1153
    %1624 = vmatpush1.bf16.msra.mxu0 %v1152
    %1625 = vmatprep.mubr.bf16.mxu0 %v1547
    %1626 = vmatmul.mubr.bf16.gmra.mrb[0].mxu0 %v1546
    %v1627 = vpop.f32.mrb[0].mxu0
    %v1628 = vadd.f32 %v1587, %v1627
    %v1629 = vpop.f32.mrb[0].mxu0
    %v1630 = vadd.f32 %v1589, %v1629
    %v1631 = vpop.f32.mrb[0].mxu0
    %v1632 = vpop.f32.mrb[0].mxu0
    %1633 = vdwg.mxu0
    %1634 = vmatprep.subr.bf16.mxu0 %v1031
    %1635 = vmatpush1.bf16.msra.mxu0 %v1030
    %1636 = vmatprep.subr.bf16.mxu0 %v1035
    %1637 = vmatpush1.bf16.msra.mxu0 %v1034
    %1638 = vmatprep.subr.bf16.mxu0 %v1039
    %1639 = vmatpush1.bf16.msra.mxu0 %v1038
    %1640 = vmatprep.subr.bf16.mxu0 %v1043
    %1641 = vmatpush1.bf16.msra.mxu0 %v1042
    %1642 = vmatprep.subr.bf16.mxu0 %v1047
    %1643 = vmatpush1.bf16.msra.mxu0 %v1046
    %1644 = vmatprep.subr.bf16.mxu0 %v1051
    %1645 = vmatpush1.bf16.msra.mxu0 %v1050
    %1646 = vmatprep.subr.bf16.mxu0 %v1055
    %1647 = vmatpush1.bf16.msra.mxu0 %v1054
    %1648 = vmatprep.subr.bf16.mxu0 %v1059
    %1649 = vmatpush1.bf16.msra.mxu0 %v1058
    %1650 = vmatprep.subr.bf16.mxu0 %v1063
    %1651 = vmatpush1.bf16.msra.mxu0 %v1062
    %1652 = vmatprep.subr.bf16.mxu0 %v1067
    %1653 = vmatpush1.bf16.msra.mxu0 %v1066
    %1654 = vmatprep.subr.bf16.mxu0 %v1071
    %1655 = vmatpush1.bf16.msra.mxu0 %v1070
    %1656 = vmatprep.subr.bf16.mxu0 %v1075
    %1657 = vmatpush1.bf16.msra.mxu0 %v1074
    %1658 = vmatprep.subr.bf16.mxu0 %v1079
    %1659 = vmatpush1.bf16.msra.mxu0 %v1078
    %1660 = vmatprep.subr.bf16.mxu0 %v1083
    %1661 = vmatpush1.bf16.msra.mxu0 %v1082
    %1662 = vmatprep.subr.bf16.mxu0 %v1087
    %1663 = vmatpush1.bf16.msra.mxu0 %v1086
    %1664 = vmatprep.subr.bf16.mxu0 %v1091
    %1665 = vmatpush1.bf16.msra.mxu0 %v1090
    %1666 = vmatprep.mubr.bf16.mxu0 %v1545
    %1667 = vmatmul.mubr.bf16.gmra.mrb[0].mxu0 %v1544
    %v1668 = vpop.f32.mrb[0].mxu0
    %v1669 = vadd.f32 %v602, %v1668
    %v1670 = vpop.f32.mrb[0].mxu0
    %v1671 = vadd.f32 %v606, %v1670
    %v1672 = vpop.f32.mrb[0].mxu0
    %v1673 = vpop.f32.mrb[0].mxu0
    %1674 = vdwg.mxu0
    %1675 = vmatprep.subr.bf16.mxu0 %v1095
    %1676 = vmatpush1.bf16.msra.mxu0 %v1094
    %1677 = vmatprep.subr.bf16.mxu0 %v1099
    %1678 = vmatpush1.bf16.msra.mxu0 %v1098
    %1679 = vmatprep.subr.bf16.mxu0 %v1103
    %1680 = vmatpush1.bf16.msra.mxu0 %v1102
    %1681 = vmatprep.subr.bf16.mxu0 %v1107
    %1682 = vmatpush1.bf16.msra.mxu0 %v1106
    %1683 = vmatprep.subr.bf16.mxu0 %v1111
    %1684 = vmatpush1.bf16.msra.mxu0 %v1110
    %1685 = vmatprep.subr.bf16.mxu0 %v1115
    %1686 = vmatpush1.bf16.msra.mxu0 %v1114
    %1687 = vmatprep.subr.bf16.mxu0 %v1119
    %1688 = vmatpush1.bf16.msra.mxu0 %v1118
    %1689 = vmatprep.subr.bf16.mxu0 %v1123
    %1690 = vmatpush1.bf16.msra.mxu0 %v1122
    %1691 = vmatprep.subr.bf16.mxu0 %v1127
    %1692 = vmatpush1.bf16.msra.mxu0 %v1126
    %1693 = vmatprep.subr.bf16.mxu0 %v1131
    %1694 = vmatpush1.bf16.msra.mxu0 %v1130
    %1695 = vmatprep.subr.bf16.mxu0 %v1135
    %1696 = vmatpush1.bf16.msra.mxu0 %v1134
    %1697 = vmatprep.subr.bf16.mxu0 %v1139
    %1698 = vmatpush1.bf16.msra.mxu0 %v1138
    %1699 = vmatprep.subr.bf16.mxu0 %v1143
    %1700 = vmatpush1.bf16.msra.mxu0 %v1142
    %1701 = vmatprep.subr.bf16.mxu0 %v1147
    %1702 = vmatpush1.bf16.msra.mxu0 %v1146
    %1703 = vmatprep.subr.bf16.mxu0 %v1151
    %1704 = vmatpush1.bf16.msra.mxu0 %v1150
    %1705 = vmatprep.subr.bf16.mxu0 %v1155
    %1706 = vmatpush1.bf16.msra.mxu0 %v1154
    %1707 = vmatprep.mubr.bf16.mxu0 %v1547
    %1708 = vmatmul.mubr.bf16.gmra.mrb[0].mxu0 %v1546
    %v1709 = vpop.f32.mrb[0].mxu0
    %v1710 = vadd.f32 %v1669, %v1709
    %v1711 = vpop.f32.mrb[0].mxu0
    %v1712 = vadd.f32 %v1671, %v1711
    %v1713 = vpop.f32.mrb[0].mxu0
    %v1714 = vpop.f32.mrb[0].mxu0
    %1715 = vdwg.mxu0
    %v1716 = vtanh.pop %v1628
    %v1717 = vtanh.pop %v1630
    %v1718 = vtanh.pop %v1710
    %v1719 = vtanh.pop %v1712
    %v1724 = vcombine.low %v1716, %v1717
    %v1725 = vcombine.high %v1716, %v1717
    %v1726 = vcombine.low %v1718, %v1719
    %v1727 = vcombine.high %v1718, %v1719
    %v1729 = vunpack.c.l.s4 1983009808
    %v1730 = vunpack.c.0.s8 %v1729
    %v1731 = vlaneseq
    %v1732 = vshrl.u32 %v1731, 7
    %v1733 = vsub.s32 %v1730, %v1732
    %v1734 = vrot.slane %v1724, %v1733
    %v1736 = vunpack.c.l.s4 1983009808
    %v1737 = vunpack.c.0.s8 %v1736
    %v1738 = vlaneseq
    %v1739 = vshrl.u32 %v1738, 7
    %v1740 = vsub.s32 %v1737, %v1739
    %v1741 = vrot.slane %v1725, %v1740
    %v1743 = vunpack.c.l.s4 1983009808
    %v1744 = vunpack.c.0.s8 %v1743
    %v1745 = vlaneseq
    %v1746 = vshrl.u32 %v1745, 7
    %v1747 = vsub.s32 %v1744, %v1746
    %v1748 = vrot.slane %v1726, %v1747
    %v1750 = vunpack.c.l.s4 1983009808
    %v1751 = vunpack.c.0.s8 %v1750
    %v1752 = vlaneseq
    %v1753 = vshrl.u32 %v1752, 7
    %v1754 = vsub.s32 %v1751, %v1753
    %v1755 = vrot.slane %v1727, %v1754
    %v1756 = vcombine.low %v1734, %v1748
    %v1757 = vcombine.high %v1734, %v1748
    %v1758 = vcombine.low %v1741, %v1755
    %v1762 = vmul.f32 %v1448, %v1448
    %v1763 = vmul.f32 %v1449, %v1449
    %v1764 = vmul.f32 %v1450, %v1450
    %v1765 = vmul.f32 %v1451, %v1451
    %vm1766 = vcmask 1041408
    %v1767 = vsel %vm1766, %v1762, 0.0
    %v1768 = vsel %vm1766, %v1763, 0.0
    %v1769 = vadd.f32 %v1767, %v1768
    %v1770 = vsel %vm1766, %v1764, 0.0
    %v1771 = vadd.f32 %v1769, %v1770
    %v1772 = vsel %vm1766, %v1765, 0.0
    %v1773 = vadd.f32 %v1771, %v1772
    %1774 = vadd.xlane.f32.xlu0 %v1773
    %v1775 = vpop.xlane.xlu0 %1774
    %v1776 = vmax.f32 %v1775, 1e-12
    %v1777 = vrsqrt.pop %v1776
    %v1778 = vmul.f32 %v1448, %v1777
    %v1779 = vmul.f32 %v1449, %v1777
    %v1780 = vmul.f32 %v1450, %v1777
    %v1781 = vmul.f32 %v1451, %v1777
    %v1786 = vcombine.low %v1778, %v1779
    %v1787 = vcombine.low %v1780, %v1781
    %v1789 = vunpack.c.l.s4 1983009808
    %v1790 = vunpack.c.0.s8 %v1789
    %v1791 = vlaneseq
    %v1792 = vshrl.u32 %v1791, 7
    %v1793 = vsub.s32 %v1790, %v1792
    %v1794 = vrot.slane %v1786, %v1793
    %v1796 = vunpack.c.l.s4 1983009808
    %v1797 = vunpack.c.0.s8 %v1796
    %v1798 = vlaneseq
    %v1799 = vshrl.u32 %v1798, 7
    %v1800 = vsub.s32 %v1797, %v1799
    %v1801 = vrot.slane %v1787, %v1800
    %v1802 = vcombine.low %v1794, %v1801
    %v1804 = vmul.f32 %v1756, %v1802
    %v1805 = vmul.f32 %v1757, %v1802
    %v1806 = vmul.f32 %v1758, %v1802
    %v1810 = vcombine.high %v1804, %v1804
    %v1812 = vunpack.c.l.s4 1983009808
    %v1813 = vunpack.c.0.s8 %v1812
    %v1814 = vlaneseq
    %v1815 = vshrl.u32 %v1814, 7
    %v1816 = vsub.s32 %v1813, %v1815
    %v1817 = vrot.slane %v1804, %v1816
    %v1819 = vunpack.c.l.s4 1983009808
    %v1820 = vunpack.c.0.s8 %v1819
    %v1821 = vlaneseq
    %v1822 = vshrl.u32 %v1821, 7
    %v1823 = vsub.s32 %v1820, %v1822
    %v1824 = vrot.slane %v1810, %v1823
    %v1825 = vcombine.high %v1817, %v1817
    %v1826 = vcombine.high %v1824, %v1824
    %v1827 = vcombine.high %v1805, %v1805
    %v1829 = vunpack.c.l.s4 1983009808
    %v1830 = vunpack.c.0.s8 %v1829
    %v1831 = vlaneseq
    %v1832 = vshrl.u32 %v1831, 7
    %v1833 = vsub.s32 %v1830, %v1832
    %v1834 = vrot.slane %v1805, %v1833
    %v1836 = vunpack.c.l.s4 1983009808
    %v1837 = vunpack.c.0.s8 %v1836
    %v1838 = vlaneseq
    %v1839 = vshrl.u32 %v1838, 7
    %v1840 = vsub.s32 %v1837, %v1839
    %v1841 = vrot.slane %v1827, %v1840
    %v1842 = vcombine.high %v1834, %v1834
    %v1843 = vcombine.high %v1841, %v1841
    %v1844 = vcombine.high %v1806, %v1806
    %v1846 = vunpack.c.l.s4 1983009808
    %v1847 = vunpack.c.0.s8 %v1846
    %v1848 = vlaneseq
    %v1849 = vshrl.u32 %v1848, 7
    %v1850 = vsub.s32 %v1847, %v1849
    %v1851 = vrot.slane %v1806, %v1850
    %v1853 = vunpack.c.l.s4 1983009808
    %v1854 = vunpack.c.0.s8 %v1853
    %v1855 = vlaneseq
    %v1856 = vshrl.u32 %v1855, 7
    %v1857 = vsub.s32 %v1854, %v1856
    %v1858 = vrot.slane %v1844, %v1857
    %v1859 = vcombine.high %v1851, %v1851
    %v1860 = vcombine.high %v1858, %v1858
    %v1873 = vsel %vm1766, %v1817, 0.0
    %v1874 = vsel %vm1766, %v1825, 0.0
    %v1875 = vadd.f32 %v1873, %v1874
    %v1876 = vsel %vm1766, %v1824, 0.0
    %v1877 = vadd.f32 %v1875, %v1876
    %v1878 = vsel %vm1766, %v1826, 0.0
    %v1879 = vadd.f32 %v1877, %v1878
    %1880 = vadd.xlane.f32.xlu0 %v1879
    %v1881 = vpop.xlane.xlu0 %1880
    %v1882 = vsel %vm1766, %v1834, 0.0
    %v1883 = vsel %vm1766, %v1842, 0.0
    %v1884 = vadd.f32 %v1882, %v1883
    %v1885 = vsel %vm1766, %v1841, 0.0
    %v1886 = vadd.f32 %v1884, %v1885
    %v1887 = vsel %vm1766, %v1843, 0.0
    %v1888 = vadd.f32 %v1886, %v1887
    %1889 = vadd.xlane.f32.xlu0 %v1888
    %v1890 = vpop.xlane.xlu0 %1889
    %v1891 = vsel %vm1766, %v1851, 0.0
    %v1892 = vsel %vm1766, %v1859, 0.0
    %v1893 = vadd.f32 %v1891, %v1892
    %v1894 = vsel %vm1766, %v1858, 0.0
    %v1895 = vadd.f32 %v1893, %v1894
    %v1896 = vsel %vm1766, %v1860, 0.0
    %v1897 = vadd.f32 %v1895, %v1896
    %1898 = vadd.xlane.f32.xlu0 %v1897
    %v1899 = vpop.xlane.xlu0 %1898
    %v1900 = vmul.f32 %v1756, %v1756
    %v1901 = vmul.f32 %v1757, %v1757
    %v1902 = vmul.f32 %v1758, %v1758
    %v1906 = vcombine.high %v1900, %v1900
    %v1908 = vunpack.c.l.s4 1983009808
    %v1909 = vunpack.c.0.s8 %v1908
    %v1910 = vlaneseq
    %v1911 = vshrl.u32 %v1910, 7
    %v1912 = vsub.s32 %v1909, %v1911
    %v1913 = vrot.slane %v1900, %v1912
    %v1915 = vunpack.c.l.s4 1983009808
    %v1916 = vunpack.c.0.s8 %v1915
    %v1917 = vlaneseq
    %v1918 = vshrl.u32 %v1917, 7
    %v1919 = vsub.s32 %v1916, %v1918
    %v1920 = vrot.slane %v1906, %v1919
    %v1921 = vcombine.high %v1913, %v1913
    %v1922 = vcombine.high %v1920, %v1920
    %v1923 = vcombine.high %v1901, %v1901
    %v1925 = vunpack.c.l.s4 1983009808
    %v1926 = vunpack.c.0.s8 %v1925
    %v1927 = vlaneseq
    %v1928 = vshrl.u32 %v1927, 7
    %v1929 = vsub.s32 %v1926, %v1928
    %v1930 = vrot.slane %v1901, %v1929
    %v1932 = vunpack.c.l.s4 1983009808
    %v1933 = vunpack.c.0.s8 %v1932
    %v1934 = vlaneseq
    %v1935 = vshrl.u32 %v1934, 7
    %v1936 = vsub.s32 %v1933, %v1935
    %v1937 = vrot.slane %v1923, %v1936
    %v1938 = vcombine.high %v1930, %v1930
    %v1939 = vcombine.high %v1937, %v1937
    %v1940 = vcombine.high %v1902, %v1902
    %v1942 = vunpack.c.l.s4 1983009808
    %v1943 = vunpack.c.0.s8 %v1942
    %v1944 = vlaneseq
    %v1945 = vshrl.u32 %v1944, 7
    %v1946 = vsub.s32 %v1943, %v1945
    %v1947 = vrot.slane %v1902, %v1946
    %v1949 = vunpack.c.l.s4 1983009808
    %v1950 = vunpack.c.0.s8 %v1949
    %v1951 = vlaneseq
    %v1952 = vshrl.u32 %v1951, 7
    %v1953 = vsub.s32 %v1950, %v1952
    %v1954 = vrot.slane %v1940, %v1953
    %v1955 = vcombine.high %v1947, %v1947
    %v1956 = vcombine.high %v1954, %v1954
    %v1969 = vsel %vm1766, %v1913, 0.0
    %v1970 = vsel %vm1766, %v1921, 0.0
    %v1971 = vadd.f32 %v1969, %v1970
    %v1972 = vsel %vm1766, %v1920, 0.0
    %v1973 = vadd.f32 %v1971, %v1972
    %v1974 = vsel %vm1766, %v1922, 0.0
    %v1975 = vadd.f32 %v1973, %v1974
    %1976 = vadd.xlane.f32.xlu0 %v1975
    %v1977 = vpop.xlane.xlu0 %1976
    %v1978 = vsel %vm1766, %v1930, 0.0
    %v1979 = vsel %vm1766, %v1938, 0.0
    %v1980 = vadd.f32 %v1978, %v1979
    %v1981 = vsel %vm1766, %v1937, 0.0
    %v1982 = vadd.f32 %v1980, %v1981
    %v1983 = vsel %vm1766, %v1939, 0.0
    %v1984 = vadd.f32 %v1982, %v1983
    %1985 = vadd.xlane.f32.xlu0 %v1984
    %v1986 = vpop.xlane.xlu0 %1985
    %v1987 = vsel %vm1766, %v1947, 0.0
    %v1988 = vsel %vm1766, %v1955, 0.0
    %v1989 = vadd.f32 %v1987, %v1988
    %v1990 = vsel %vm1766, %v1954, 0.0
    %v1991 = vadd.f32 %v1989, %v1990
    %v1992 = vsel %vm1766, %v1956, 0.0
    %v1993 = vadd.f32 %v1991, %v1992
    %1994 = vadd.xlane.f32.xlu0 %v1993
    %v1995 = vpop.xlane.xlu0 %1994
    %v1996 = vmax.f32 %v1977, 1e-12
    %v1997 = vmax.f32 %v1986, 1e-12
    %v1998 = vmax.f32 %v1995, 1e-12
    %v1999 = vrsqrt.pop %v1996
    %v2000 = vrsqrt.pop %v1997
    %v2001 = vrsqrt.pop %v1998
    %v2002 = vmul.f32 %v1881, %v1999
    %v2003 = vmul.f32 %v1890, %v2000
    %v2004 = vmul.f32 %v1899, %v2001
    %v2005 = vld [vmem:[%s2] sm:$0x7]
    %vm2006 = vcmp.gt.f32.partialorder %v2005, 0.5
    %v2007 = vsel %vm2006, 1, 0
    %2008 = vset.pattern.permute.xlu0 0
    %2009 = vperm.xlu0 %2008, %v2007
    %v2010 = vpop.permute.xlu0 %2009
    %vm2011 = vcmp.eq.s32.totalorder %v2010, 1
    %v2015 = vlaneseq
    %v2016 = vand.u32 %v2015, 127
    %v2017 = vlaneseq
    %v2018 = vshrl.u32 %v2017, 7
    %v2019 = vsub.s32 %v2016, %v2018
    %v2020 = vrot.slane %v2002, %v2019
    %v2021 = vlaneseq
    %v2022 = vshrl.u32 %v2021, 7
    %v2023 = vsub.s32 %v2016, %v2022
    %v2024 = vrot.slane %v2003, %v2023
    %v2025 = vlaneseq
    %v2026 = vshrl.u32 %v2025, 7
    %v2027 = vsub.s32 %v2016, %v2026
    %v2028 = vrot.slane %v2004, %v2027
    %v2029 = vsel %vm628, %v2024, %v2020
    %v2030 = vsel %vm1503, %v2028, %v2029
    %v2032 = vsel %vm2011, %v2030, inf
    %vm2033 = vcmask 10240
    %v2034 = vsel %vm2033, %v2032, inf
    %v2035 = vrot.slane %v2034, 4
    %v2036 = vmin.f32 %v2034, %v2035
    %v2037 = vrot.slane %v2036, 2
    %v2038 = vmin.f32 %v2036, %v2037
    %v2039 = vrot.slane %v2038, 1
    %v2040 = vmin.f32 %v2038, %v2039
    %v2041 = vmin.f32 %v2040, 1.0
    %vm2042 = vcmask 8192
    %2043 = vst.msk [vmem:[#allocation5] sm:$0x1] %vm2042, %v2041
    %vm2044 = vmxor %vm2006, 1
    %vm2045 = vcmp.gt.f32.partialorder %v2002, 0.0
    %v2046 = vsel %vm2044, 1, 0
    %2047 = vset.pattern.permute.xlu0 0
    %2048 = vperm.xlu0 %2047, %v2046
    %v2049 = vpop.permute.xlu0 %2048
    %vm2050 = vcmp.eq.s32.totalorder %v2049, 1
    %v2051 = vsel %vm2045, 1, 0
    %v2052 = vlaneseq
    %v2053 = vshrl.u32 %v2052, 7
    %v2054 = vsub.s32 %v2016, %v2053
    %v2055 = vrot.slane %v2051, %v2054
    %vm2056 = vcmp.ne.s32.totalorder %v2055, 0
    %vm2057 = vmand %vm2050, %vm2056
    %v2058 = vsub.f32 1.0, %v2002
    %v2060 = vlaneseq
    %v2061 = vshrl.u32 %v2060, 7
    %v2062 = vsub.s32 %v2016, %v2061
    %v2063 = vrot.slane %v2058, %v2062
    %v2065 = vsel %vm2057, %v2063, 0.0
    %v2067 = vlaneseq
    %v2068 = vshrl.u32 %v2067, 7
    %v2069 = vsub.s32 0, %v2068
    %v2070 = vrot.slane %v2065, %v2069
    %2072 = vbcast.lane.b32.xlu0 %v2070, 256
    %v2073 = vpop.permute.xlu0 %2072
    %vm2075 = vcmp.gt.f32.partialorder %v2003, %v2073
    %v2076 = vsel %vm2075, 1, 0
    %2077 = vset.pattern.permute.xlu0 0
    %2078 = vperm.xlu0 %2077, %v2076
    %v2079 = vpop.permute.xlu0 %2078
    %v2080 = vlaneseq
    %v2081 = vshrl.u32 %v2080, 7
    %v2082 = vsub.s32 %v2016, %v2081
    %v2083 = vrot.slane %v2079, %v2082
    %vm2084 = vcmp.ne.s32.totalorder %v2083, 0
    %vm2085 = vmand %vm2050, %vm2084
    %v2086 = vsub.f32 1.0, %v2003
    %v2088 = vlaneseq
    %v2089 = vshrl.u32 %v2088, 7
    %v2090 = vsub.s32 %v2016, %v2089
    %v2091 = vrot.slane %v2086, %v2090
    %v2093 = vrot.slane %v2065, 7
    %v2095 = vsel %vm2085, %v2091, %v2093
    %v2097 = vlaneseq
    %v2098 = vshrl.u32 %v2097, 7
    %v2099 = vsub.s32 1, %v2098
    %v2100 = vrot.slane %v2095, %v2099
    %2102 = vbcast.lane.b32.xlu0 %v2100, 256
    %v2103 = vpop.permute.xlu0 %2102
    %vm2105 = vcmp.gt.f32.partialorder %v2004, %v2103
    %v2106 = vsel %vm2105, 1, 0
    %2107 = vset.pattern.permute.xlu0 0
    %2108 = vperm.xlu0 %2107, %v2106
    %v2109 = vpop.permute.xlu0 %2108
    %v2110 = vlaneseq
    %v2111 = vshrl.u32 %v2110, 7
    %v2112 = vsub.s32 %v2016, %v2111
    %v2113 = vrot.slane %v2109, %v2112
    %vm2114 = vcmp.ne.s32.totalorder %v2113, 0
    %vm2115 = vmand %vm2050, %vm2114
    %v2116 = vsub.f32 1.0, %v2004
    %v2118 = vlaneseq
    %v2119 = vshrl.u32 %v2118, 7
    %v2120 = vsub.s32 %v2016, %v2119
    %v2121 = vrot.slane %v2116, %v2120
    %v2123 = vrot.slane %v2095, 7
    %v2125 = vsel %vm2115, %v2121, %v2123
    %vm2126 = vcmask 10242
    %2127 = vst.msk [vmem:[#allocation7 - $0x2] sm:$0x4] %vm2126, %v2125
    // Predicated region
    $region88: #{_train_scores.1} parent=1 // pred_check
      _
    $region89: #{_train_scores.1} parent=1 // pred_check_branch
      %2129 = sbr.rel (0) target = $region91
    $region90: #{_train_scores.1} parent=1 // pred_region
      %s2131 = ssub.s32 16, 16
      %2132 = vsyncadd [#allocation6], %s2131
      %s2134 = sshll.u32 [#allocation5], 4
      %s2135 = int_to_ptr.vmem [resolvable:$true] %s2134
      %2137 = dma.vmem_to_hbm [thread:$0]  %s2135, 16, %s5, [#allocation6]
    $region91: #{_train_scores.1} parent=1 // pred_fallthru
      _
    // Predicated region
    $region92: #{_train_scores.1} parent=1 // pred_check
      _
    $region93: #{_train_scores.1} parent=1 // pred_check_branch
      %2139 = sbr.rel (0) target = $region95
    $region94: #{_train_scores.1} parent=1 // pred_region
      %s2141 = ssub.s32 16, 16
      %2142 = vsyncadd [#allocation8], %s2141
      %s2144 = sshll.u32 [#allocation7], 4
      %s2145 = int_to_ptr.vmem [resolvable:$true] %s2144
      %2147 = dma.vmem_to_hbm [thread:$0]  %s2145, 16, %s6, [#allocation8]
    $region95: #{_train_scores.1} parent=1 // pred_fallthru
      _
    // Predicated region
    $region96: #{_train_scores.1} parent=1 // pred_check
      _
    $region97: #{_train_scores.1} parent=1 // pred_check_branch
      %2149 = sbr.rel (0) target = $region99
    $region98: #{_train_scores.1} parent=1 // pred_region
      %2150 = dma.done [#allocation6], 16
    $region99: #{_train_scores.1} parent=1 // pred_fallthru
      _
    // Predicated region
    $region100: #{_train_scores.1} parent=1 // pred_check
      _
    $region101: #{_train_scores.1} parent=1 // pred_check_branch
      %2152 = sbr.rel (0) target = $region103
    $region102: #{_train_scores.1} parent=1 // pred_region
      %2153 = dma.done [#allocation8], 16
    $region103: #{_train_scores.1} parent=1 // pred_fallthru
      _
    %2154 = vsyncpa [#allocation6], 1
    %2155 = vsyncpa [#allocation8], 1
  %2156 = vsyncmov [#allocation4]
  %s2157 = vpop.sfrf %2156
  %p2158 = scmp.eq.s32.totalorder %s2157, 0
  %p2159 = pneg %p2158
  %2161 = shalt.err (%p2159)
  %s2162 = scalar_lea.sflag [#allocation4], 1
  %2163 = vsyncmov %s2162
  %s2164 = vpop.sfrf %2163
  %p2165 = scmp.eq.s32.totalorder %s2164, 0
  %p2166 = pneg %p2165
  %2168 = shalt.err (%p2166)

</llo_original>
